<compile_context>
chip_gen: v6e
topology: v6e:2x2x1
jax: 0.10.0
libtpu: 0.0.40
codegen_flags: <defaults>
</compile_context>

<pallas_src>
import jax
import jax.numpy as jnp
from jax.experimental import pallas as pl
from jax.experimental.pallas import tpu as pltpu

# ---- model hyper-parameters (small, consistent with the module) ------------
N_EMBD = 32                     # n_embd
N_HEADS = 4                     # n_heads
HEAD_SIZE = N_EMBD // N_HEADS   # 8
BLOCK_SIZE = 8                  # sequence length T
BATCH = 2
N_LAYERS = 1                    # the spec is a single Block; kernel supports L >= 1
LN_EPS = 1e-5


def _layernorm(x, gamma, beta):
    # x: (N, C); gamma/beta: (1, C); f32 throughout
    mean = jnp.mean(x, axis=-1, keepdims=True)
    var = jnp.mean((x - mean) ** 2, axis=-1, keepdims=True)
    return (x - mean) * jax.lax.rsqrt(var + LN_EPS) * gamma + beta


def block_kernel(x_ref, wpk_ref, w2_ref, vec_ref, out_ref):
    N, C = x_ref.shape
    T, D, H = BLOCK_SIZE, HEAD_SIZE, N_HEADS
    B = N // T

    layer = pl.program_id(0)

    # Layer 0: seed the VMEM-resident activation slab from the input.
    @pl.when(layer == 0)
    def _():
        out_ref[...] = x_ref[...]

    x = out_ref[...]                                   # (N, C) f32, resident across layers

    # ---- parameter vectors: one (8, 128) f32 tile ---------------------------
    vec = vec_ref[...]
    ln1_g, ln1_b = vec[0:1, :C], vec[1:2, :C]
    ln2_g, ln2_b = vec[2:3, :C], vec[3:4, :C]
    b_qkv = vec[4:5, :3 * C]                           # (1, 3C)
    b_prj = vec[5:6, :C]                               # (1, C)
    b_ff1 = vec[6:7, :]                                # (1, 4C)
    b_ff2 = vec[7:8, :C]                               # (1, C)
    # TODO(synk): vec_ref[pl.ds(row, N, stride=0), :w] sublane-broadcast reads would
    # hand these rows out pre-replicated across the N activation rows; kept the plain
    # full-tile load + row slices (second-order at this size, zero lowering risk).

    # ---- fused weight slabs (bf16, static lane slices) ----------------------
    wpk = wpk_ref[...]                                 # (C, 8C) bf16
    w_qkv = wpk[:, :3 * C]                             # (C, 3C)
    w_prj = wpk[:, 3 * C:4 * C]                        # (C, C)
    w_ff1 = wpk[:, 4 * C:]                             # (C, 4C)
    w_ff2 = w2_ref[...]                                # (4C, C) bf16

    # ========================= attention branch =========================
    xn = _layernorm(x, ln1_g, ln1_b)
    qkv = jnp.dot(xn.astype(jnp.bfloat16), w_qkv,
                  preferred_element_type=jnp.float32) + b_qkv      # (N, 3C) f32
    qkv = qkv.astype(jnp.bfloat16)   # single cast; Q already pre-scaled by C**-0.5

    # Projection bias seeds the f32 accumulator; per-head projections accumulate
    # into it (no head concat, no full-width bf16 cast).
    attn = jnp.broadcast_to(b_prj, (N, C))
    for h in range(H):               # static unroll, lane-aligned slices
        k_h = qkv[:, h * D:(h + 1) * D].reshape(B, T, D)
        q_h = qkv[:, C + h * D:C + (h + 1) * D].reshape(B, T, D)
        v_h = qkv[:, 2 * C + h * D:2 * C + (h + 1) * D].reshape(B, T, D)
        # NOTE: scores are k @ q^T (as in the PyTorch source) and no causal mask
        # (the reference's masked_fill result is discarded).
        wei = jnp.einsum('btd,bsd->bts', k_h, q_h,
                         preferred_element_type=jnp.float32)       # (B, T, T)
        wei = jnp.exp(wei - jnp.max(wei, axis=-1, keepdims=True))
        wei = wei * pl.reciprocal(jnp.sum(wei, axis=-1, keepdims=True),
                                  approx=True)
        o_h = jnp.einsum('bts,bsd->btd', wei.astype(jnp.bfloat16), v_h,
                         preferred_element_type=jnp.float32)       # (B, T, D)
        attn = attn + jnp.dot(o_h.reshape(N, D).astype(jnp.bfloat16),
                              w_prj[h * D:(h + 1) * D, :],
                              preferred_element_type=jnp.float32)

    x = x + attn                                                   # residual 1

    # ========================= feed-forward branch =======================
    xn2 = _layernorm(x, ln2_g, ln2_b)
    h1 = jnp.dot(xn2.astype(jnp.bfloat16), w_ff1,
                 preferred_element_type=jnp.float32) + b_ff1
    h1 = jnp.maximum(h1, 0.0)                                      # ReLU
    ff = jnp.dot(h1.astype(jnp.bfloat16), w_ff2,
                 preferred_element_type=jnp.float32) + b_ff2
    x = x + ff                                                     # residual 2

    out_ref[...] = x.astype(out_ref.dtype)


def transformer_block(x, layer_params):
    """x: (B, T, C) f32.  layer_params = (w_packed, w2, vecs), each with a
    leading layer dimension L; L layers run fused in a single pallas_call."""
    w_packed, w2, vecs = layer_params
    L = w_packed.shape[0]
    B, T, C = x.shape
    N = B * T
    x2d = x.reshape(N, C)            # wrapper-side reshape: free layout plumbing

    out2d = pl.pallas_call(
        block_kernel,
        out_shape=jax.ShapeDtypeStruct((N, C), x.dtype),
        grid_spec=pltpu.PrefetchScalarGridSpec(
            num_scalar_prefetch=0,
            grid=(L,),
            in_specs=[
                pl.BlockSpec((N, C), lambda l: (0, 0)),              # activation (fetched once)
                pl.BlockSpec((None, C, 8 * C), lambda l: (l, 0, 0)),  # per-layer weight slab
                pl.BlockSpec((None, 4 * C, C), lambda l: (l, 0, 0)),  # per-layer MLP w2
                pl.BlockSpec((None, 8, 4 * C), lambda l: (l, 0, 0)),  # per-layer LN/bias vecs
            ],
            out_specs=pl.BlockSpec((N, C), lambda l: (0, 0)),         # resident across layers
        ),
        compiler_params=pltpu.CompilerParams(
            # Layer axis is a sequential carry of the activation -> "arbitrary".
            dimension_semantics=("arbitrary",),
            # ~25 KiB of params per layer; plenty of headroom even on v7x (64 MiB VMEM).
            vmem_limit_bytes=32 * 1024 * 1024,
        ),
    )(x2d, w_packed, w2, vecs)
    return out2d.reshape(B, T, C)


def init_params(key, n_embd=N_EMBD, n_layers=N_LAYERS):
    """Deterministic synthetic parameters, built directly in packed per-layer form."""
    C, H4 = n_embd, 4 * n_embd
    std = 0.02
    scale = C ** (-0.5)              # n_embd**-0.5, folded into the Q projection

    w_slabs, w2_slabs, vec_slabs = [], [], []
    for lk in jax.random.split(key, n_layers):
        ks = jax.random.split(lk, 12)

        def w(k, shape):
            return std * jax.random.normal(k, shape, dtype=jnp.float32)

        wk, wq, wv = w(ks[0], (C, C)), w(ks[1], (C, C)), w(ks[2], (C, C))
        bk, bq, bv = w(ks[3], (C,)), w(ks[4], (C,)), w(ks[5], (C,))
        wp, bp = w(ks[6], (C, C)), w(ks[7], (C,))
        w1, b1 = w(ks[8], (C, H4)), w(ks[9], (H4,))
        w2, b2 = w(ks[10], (H4, C)), w(ks[11], (C,))

        wq, bq = wq * scale, bq * scale   # fold the score scale into Q at init time

        # Fused weight slab: [Wk | Wq | Wv | Wproj | W1] -> (C, 8C), bf16 for MXU.
        w_slabs.append(jnp.concatenate([wk, wq, wv, wp, w1], axis=1).astype(jnp.bfloat16))
        w2_slabs.append(w2.astype(jnp.bfloat16))

        # All (1, .) vectors packed into one (8, 4C) = (8, 128) f32 tile.
        def row(vals):
            out = jnp.zeros((H4,), jnp.float32)
            return out.at[:vals.shape[0]].set(vals)

        vec_slabs.append(jnp.stack([
            row(jnp.ones((C,), jnp.float32)),     # ln1 gamma
            row(jnp.zeros((C,), jnp.float32)),    # ln1 beta
            row(jnp.ones((C,), jnp.float32)),     # ln2 gamma
            row(jnp.zeros((C,), jnp.float32)),    # ln2 beta
            row(jnp.concatenate([bk, bq, bv])),   # fused QKV bias (3C), q pre-scaled
            row(bp),                              # proj bias
            row(b1),                              # ff bias 1 (full 4C width)
            row(b2),                              # ff bias 2
        ], axis=0))

    return (jnp.stack(w_slabs), jnp.stack(w2_slabs), jnp.stack(vec_slabs))


if __name__ == "__main__":
    key = jax.random.PRNGKey(0)
    kx, kp = jax.random.split(key)

    x = jax.random.normal(kx, (BATCH, BLOCK_SIZE, N_EMBD), dtype=jnp.float32)
    params = init_params(kp)          # L = 1 layer: exactly one `Block`

    out = transformer_block(x, params)
    jax.block_until_ready(out)
    assert out.shape == (BATCH, BLOCK_SIZE, N_EMBD)
    assert bool(jnp.all(jnp.isfinite(out)))
    print("KERNEL_OK")
</pallas_src>

<mosaic_0001>
module attributes {stable_mosaic.version = 11 : i64} {
  func.func @block_kernel(%arg0: i32, %arg1: memref<16x32xf32, #tpu.memory_space<vmem>>, %arg2: memref<1x32x256xbf16, #tpu.memory_space<vmem>>, %arg3: memref<1x128x32xbf16, #tpu.memory_space<vmem>>, %arg4: memref<1x8x128xf32, #tpu.memory_space<vmem>>, %arg5: memref<16x32xf32, #tpu.memory_space<vmem>>) attributes {dimension_semantics = [#tpu.dimension_semantics<arbitrary>], iteration_bounds = array<i64: 1>, scalar_prefetch = 0 : i64, scratch_operands = 0 : i64, tpu.core_type = #tpu.core_type<tc>, window_params = [{pipeline_mode = #tpu.pipeline_mode<synchronous>, transform_indices = @transform_0, window_bounds = array<i64: 16, 32>}, {transform_indices = @transform_1, window_bounds = array<i64: 1, 32, 256>}, {transform_indices = @transform_2, window_bounds = array<i64: 1, 128, 32>}, {transform_indices = @transform_3, window_bounds = array<i64: 1, 8, 128>}, {pipeline_mode = #tpu.pipeline_mode<synchronous>, transform_indices = @transform_4, window_bounds = array<i64: 16, 32>}]} {
    %c0_i32 = arith.constant 0 : i32
    %0 = arith.cmpi eq, %arg0, %c0_i32 : i32
    %1 = arith.extui %0 : i1 to i32
    %c0_i32_0 = arith.constant 0 : i32
    %2 = arith.cmpi ne, %1, %c0_i32_0 : i32
    scf.if %2 {
      %c0_46 = arith.constant 0 : index
      %c0_47 = arith.constant 0 : index
      %181 = vector.load %arg1[%c0_46, %c0_47] : memref<16x32xf32, #tpu.memory_space<vmem>>, vector<16x32xf32>
      %c0_48 = arith.constant 0 : index
      %c0_49 = arith.constant 0 : index
      %182 = vector.load %arg5[%c0_48, %c0_49] : memref<16x32xf32, #tpu.memory_space<vmem>>, vector<16x32xf32>
      tpu.vector_store %arg5[%c0_48, %c0_49], %181 {strides = array<i32>} : memref<16x32xf32, #tpu.memory_space<vmem>>, vector<16x32xf32>,
    } else {
    }
    %c0 = arith.constant 0 : index
    %c0_1 = arith.constant 0 : index
    %3 = vector.load %arg5[%c0, %c0_1] : memref<16x32xf32, #tpu.memory_space<vmem>>, vector<16x32xf32>
    %c0_2 = arith.constant 0 : index
    %c0_3 = arith.constant 0 : index
    %c0_4 = arith.constant 0 : index
    %4 = vector.load %arg4[%c0_2, %c0_3, %c0_4] : memref<1x8x128xf32, #tpu.memory_space<vmem>>, vector<1x8x128xf32>
    %5 = vector.shape_cast %4 : vector<1x8x128xf32> to vector<8x128xf32>
    %6 = vector.extract_strided_slice %5 {offsets = [0, 0], sizes = [1, 32], strides = [1, 1]} : vector<8x128xf32> to vector<1x32xf32>
    %7 = vector.extract_strided_slice %5 {offsets = [1, 0], sizes = [1, 32], strides = [1, 1]} : vector<8x128xf32> to vector<1x32xf32>
    %8 = vector.extract_strided_slice %5 {offsets = [2, 0], sizes = [1, 32], strides = [1, 1]} : vector<8x128xf32> to vector<1x32xf32>
    %9 = vector.extract_strided_slice %5 {offsets = [3, 0], sizes = [1, 32], strides = [1, 1]} : vector<8x128xf32> to vector<1x32xf32>
    %10 = vector.extract_strided_slice %5 {offsets = [4, 0], sizes = [1, 96], strides = [1, 1]} : vector<8x128xf32> to vector<1x96xf32>
    %11 = vector.extract_strided_slice %5 {offsets = [5, 0], sizes = [1, 32], strides = [1, 1]} : vector<8x128xf32> to vector<1x32xf32>
    %12 = vector.extract_strided_slice %5 {offsets = [6, 0], sizes = [1, 128], strides = [1, 1]} : vector<8x128xf32> to vector<1x128xf32>
    %13 = vector.extract_strided_slice %5 {offsets = [7, 0], sizes = [1, 32], strides = [1, 1]} : vector<8x128xf32> to vector<1x32xf32>
    %c0_5 = arith.constant 0 : index
    %c0_6 = arith.constant 0 : index
    %c0_7 = arith.constant 0 : index
    %14 = vector.load %arg2[%c0_5, %c0_6, %c0_7] : memref<1x32x256xbf16, #tpu.memory_space<vmem>>, vector<1x32x256xbf16>
    %15 = vector.shape_cast %14 : vector<1x32x256xbf16> to vector<32x256xbf16>
    %16 = vector.extract_strided_slice %15 {offsets = [0, 0], sizes = [32, 96], strides = [1, 1]} : vector<32x256xbf16> to vector<32x96xbf16>
    %17 = vector.extract_strided_slice %15 {offsets = [0, 96], sizes = [32, 32], strides = [1, 1]} : vector<32x256xbf16> to vector<32x32xbf16>
    %18 = vector.extract_strided_slice %15 {offsets = [0, 128], sizes = [32, 128], strides = [1, 1]} : vector<32x256xbf16> to vector<32x128xbf16>
    %c0_8 = arith.constant 0 : index
    %c0_9 = arith.constant 0 : index
    %c0_10 = arith.constant 0 : index
    %19 = vector.load %arg3[%c0_8, %c0_9, %c0_10] : memref<1x128x32xbf16, #tpu.memory_space<vmem>>, vector<1x128x32xbf16>
    %20 = vector.shape_cast %19 : vector<1x128x32xbf16> to vector<128x32xbf16>
    %cst = arith.constant dense<0.000000e+00> : vector<16xf32>
    %21 = vector.multi_reduction <add>, %3, %cst [1] : vector<16x32xf32> to vector<16xf32>
    %22 = vector.shape_cast %21 : vector<16xf32> to vector<16x1xf32>
    %cst_11 = arith.constant 3.200000e+01 : f32
    %23 = vector.broadcast %cst_11 : f32 to vector<16x1xf32>
    %24 = arith.divf %22, %23 : vector<16x1xf32>
    %25 = vector.broadcast %24 : vector<16x1xf32> to vector<16x32xf32>
    %26 = arith.subf %3, %25 : vector<16x32xf32>
    %27 = arith.mulf %26, %26 : vector<16x32xf32>
    %cst_12 = arith.constant dense<0.000000e+00> : vector<16xf32>
    %28 = vector.multi_reduction <add>, %27, %cst_12 [1] : vector<16x32xf32> to vector<16xf32>
    %29 = vector.shape_cast %28 : vector<16xf32> to vector<16x1xf32>
    %cst_13 = arith.constant 3.200000e+01 : f32
    %30 = vector.broadcast %cst_13 : f32 to vector<16x1xf32>
    %31 = arith.divf %29, %30 : vector<16x1xf32>
    %32 = vector.broadcast %24 : vector<16x1xf32> to vector<16x32xf32>
    %33 = arith.subf %3, %32 : vector<16x32xf32>
    %cst_14 = arith.constant 9.99999974E-6 : f32
    %34 = vector.broadcast %cst_14 : f32 to vector<16x1xf32>
    %35 = arith.addf %31, %34 : vector<16x1xf32>
    %36 = math.rsqrt %35 : vector<16x1xf32>
    %37 = vector.broadcast %36 : vector<16x1xf32> to vector<16x32xf32>
    %38 = arith.mulf %33, %37 : vector<16x32xf32>
    %39 = vector.broadcast %6 : vector<1x32xf32> to vector<16x32xf32>
    %40 = arith.mulf %38, %39 : vector<16x32xf32>
    %41 = vector.broadcast %7 : vector<1x32xf32> to vector<16x32xf32>
    %42 = arith.addf %40, %41 : vector<16x32xf32>
    %43 = arith.truncf %42 : vector<16x32xf32> to vector<16x32xbf16>
    %cst_15 = arith.constant dense<0.000000e+00> : vector<16x96xf32>
    %44 = tpu.matmul %43, %16, %cst_15 {dimension_numbers = #tpu.dot_dimension_numbers<[1], [0], [0], [1], [0, 0, 1, 1], [], []>} : vector<16x32xbf16>, vector<32x96xbf16>, vector<16x96xf32> -> vector<16x96xf32>
    %45 = vector.broadcast %10 : vector<1x96xf32> to vector<16x96xf32>
    %46 = arith.addf %44, %45 : vector<16x96xf32>
    %47 = arith.truncf %46 : vector<16x96xf32> to vector<16x96xbf16>
    %48 = vector.shape_cast %11 : vector<1x32xf32> to vector<1x32xf32>
    %49 = vector.broadcast %48 : vector<1x32xf32> to vector<16x32xf32>
    %50 = vector.extract_strided_slice %47 {offsets = [0, 0], sizes = [16, 8], strides = [1, 1]} : vector<16x96xbf16> to vector<16x8xbf16>
    %51 = vector.shape_cast %50 : vector<16x8xbf16> to vector<2x8x8xbf16>
    %52 = vector.extract_strided_slice %47 {offsets = [0, 32], sizes = [16, 8], strides = [1, 1]} : vector<16x96xbf16> to vector<16x8xbf16>
    %53 = vector.shape_cast %52 : vector<16x8xbf16> to vector<2x8x8xbf16>
    %54 = vector.extract_strided_slice %47 {offsets = [0, 64], sizes = [16, 8], strides = [1, 1]} : vector<16x96xbf16> to vector<16x8xbf16>
    %55 = vector.shape_cast %54 : vector<16x8xbf16> to vector<2x8x8xbf16>
    "tpu.trace_start"() <{level = 10 : i32, message = "btd,bsd->bts"}> : () -> ()
    %cst_16 = arith.constant dense<0.000000e+00> : vector<2x8x8xf32>
    %56 = tpu.matmul %51, %53, %cst_16 {dimension_numbers = #tpu.dot_dimension_numbers<[2], [2], [1], [1], [0, 0, 0, 1, 1, 1], [0], [0]>} : vector<2x8x8xbf16>, vector<2x8x8xbf16>, vector<2x8x8xf32> -> vector<2x8x8xf32>
    "tpu.trace_stop"() : () -> ()
    %cst_17 = arith.constant dense<0xFF800000> : vector<2x8xf32>
    %57 = vector.multi_reduction <maximumf>, %56, %cst_17 [2] : vector<2x8x8xf32> to vector<2x8xf32>
    %58 = vector.shape_cast %57 : vector<2x8xf32> to vector<2x8x1xf32>
    %59 = vector.broadcast %58 : vector<2x8x1xf32> to vector<2x8x8xf32>
    %60 = arith.subf %56, %59 : vector<2x8x8xf32>
    %61 = math.exp %60 : vector<2x8x8xf32>
    %cst_18 = arith.constant dense<0.000000e+00> : vector<2x8xf32>
    %62 = vector.multi_reduction <add>, %61, %cst_18 [2] : vector<2x8x8xf32> to vector<2x8xf32>
    %63 = vector.shape_cast %62 : vector<2x8xf32> to vector<2x8x1xf32>
    %64 = tpu.reciprocal %63 {approx = true} : vector<2x8x1xf32> -> vector<2x8x1xf32>
    %65 = vector.broadcast %64 : vector<2x8x1xf32> to vector<2x8x8xf32>
    %66 = arith.mulf %61, %65 : vector<2x8x8xf32>
    %67 = arith.truncf %66 : vector<2x8x8xf32> to vector<2x8x8xbf16>
    "tpu.trace_start"() <{level = 10 : i32, message = "bts,bsd->btd"}> : () -> ()
    %cst_19 = arith.constant dense<0.000000e+00> : vector<2x8x8xf32>
    %68 = tpu.matmul %67, %55, %cst_19 {dimension_numbers = #tpu.dot_dimension_numbers<[2], [1], [1], [2], [0, 0, 0, 1, 1, 2], [0], [0]>} : vector<2x8x8xbf16>, vector<2x8x8xbf16>, vector<2x8x8xf32> -> vector<2x8x8xf32>
    "tpu.trace_stop"() : () -> ()
    %69 = vector.shape_cast %68 : vector<2x8x8xf32> to vector<16x8xf32>
    %70 = arith.truncf %69 : vector<16x8xf32> to vector<16x8xbf16>
    %71 = vector.extract_strided_slice %17 {offsets = [0, 0], sizes = [8, 32], strides = [1, 1]} : vector<32x32xbf16> to vector<8x32xbf16>
    %cst_20 = arith.constant dense<0.000000e+00> : vector<16x32xf32>
    %72 = tpu.matmul %70, %71, %cst_20 {dimension_numbers = #tpu.dot_dimension_numbers<[1], [0], [0], [1], [0, 0, 1, 1], [], []>} : vector<16x8xbf16>, vector<8x32xbf16>, vector<16x32xf32> -> vector<16x32xf32>
    %73 = arith.addf %49, %72 : vector<16x32xf32>
    %74 = vector.extract_strided_slice %47 {offsets = [0, 8], sizes = [16, 8], strides = [1, 1]} : vector<16x96xbf16> to vector<16x8xbf16>
    %75 = vector.shape_cast %74 : vector<16x8xbf16> to vector<2x8x8xbf16>
    %76 = vector.extract_strided_slice %47 {offsets = [0, 40], sizes = [16, 8], strides = [1, 1]} : vector<16x96xbf16> to vector<16x8xbf16>
    %77 = vector.shape_cast %76 : vector<16x8xbf16> to vector<2x8x8xbf16>
    %78 = vector.extract_strided_slice %47 {offsets = [0, 72], sizes = [16, 8], strides = [1, 1]} : vector<16x96xbf16> to vector<16x8xbf16>
    %79 = vector.shape_cast %78 : vector<16x8xbf16> to vector<2x8x8xbf16>
    "tpu.trace_start"() <{level = 10 : i32, message = "btd,bsd->bts"}> : () -> ()
    %cst_21 = arith.constant dense<0.000000e+00> : vector<2x8x8xf32>
    %80 = tpu.matmul %75, %77, %cst_21 {dimension_numbers = #tpu.dot_dimension_numbers<[2], [2], [1], [1], [0, 0, 0, 1, 1, 1], [0], [0]>} : vector<2x8x8xbf16>, vector<2x8x8xbf16>, vector<2x8x8xf32> -> vector<2x8x8xf32>
    "tpu.trace_stop"() : () -> ()
    %cst_22 = arith.constant dense<0xFF800000> : vector<2x8xf32>
    %81 = vector.multi_reduction <maximumf>, %80, %cst_22 [2] : vector<2x8x8xf32> to vector<2x8xf32>
    %82 = vector.shape_cast %81 : vector<2x8xf32> to vector<2x8x1xf32>
    %83 = vector.broadcast %82 : vector<2x8x1xf32> to vector<2x8x8xf32>
    %84 = arith.subf %80, %83 : vector<2x8x8xf32>
    %85 = math.exp %84 : vector<2x8x8xf32>
    %cst_23 = arith.constant dense<0.000000e+00> : vector<2x8xf32>
    %86 = vector.multi_reduction <add>, %85, %cst_23 [2] : vector<2x8x8xf32> to vector<2x8xf32>
    %87 = vector.shape_cast %86 : vector<2x8xf32> to vector<2x8x1xf32>
    %88 = tpu.reciprocal %87 {approx = true} : vector<2x8x1xf32> -> vector<2x8x1xf32>
    %89 = vector.broadcast %88 : vector<2x8x1xf32> to vector<2x8x8xf32>
    %90 = arith.mulf %85, %89 : vector<2x8x8xf32>
    %91 = arith.truncf %90 : vector<2x8x8xf32> to vector<2x8x8xbf16>
    "tpu.trace_start"() <{level = 10 : i32, message = "bts,bsd->btd"}> : () -> ()
    %cst_24 = arith.constant dense<0.000000e+00> : vector<2x8x8xf32>
    %92 = tpu.matmul %91, %79, %cst_24 {dimension_numbers = #tpu.dot_dimension_numbers<[2], [1], [1], [2], [0, 0, 0, 1, 1, 2], [0], [0]>} : vector<2x8x8xbf16>, vector<2x8x8xbf16>, vector<2x8x8xf32> -> vector<2x8x8xf32>
    "tpu.trace_stop"() : () -> ()
    %93 = vector.shape_cast %92 : vector<2x8x8xf32> to vector<16x8xf32>
    %94 = arith.truncf %93 : vector<16x8xf32> to vector<16x8xbf16>
    %95 = vector.extract_strided_slice %17 {offsets = [8, 0], sizes = [8, 32], strides = [1, 1]} : vector<32x32xbf16> to vector<8x32xbf16>
    %cst_25 = arith.constant dense<0.000000e+00> : vector<16x32xf32>
    %96 = tpu.matmul %94, %95, %cst_25 {dimension_numbers = #tpu.dot_dimension_numbers<[1], [0], [0], [1], [0, 0, 1, 1], [], []>} : vector<16x8xbf16>, vector<8x32xbf16>, vector<16x32xf32> -> vector<16x32xf32>
    %97 = arith.addf %73, %96 : vector<16x32xf32>
    %98 = vector.extract_strided_slice %47 {offsets = [0, 16], sizes = [16, 8], strides = [1, 1]} : vector<16x96xbf16> to vector<16x8xbf16>
    %99 = vector.shape_cast %98 : vector<16x8xbf16> to vector<2x8x8xbf16>
    %100 = vector.extract_strided_slice %47 {offsets = [0, 48], sizes = [16, 8], strides = [1, 1]} : vector<16x96xbf16> to vector<16x8xbf16>
    %101 = vector.shape_cast %100 : vector<16x8xbf16> to vector<2x8x8xbf16>
    %102 = vector.extract_strided_slice %47 {offsets = [0, 80], sizes = [16, 8], strides = [1, 1]} : vector<16x96xbf16> to vector<16x8xbf16>
    %103 = vector.shape_cast %102 : vector<16x8xbf16> to vector<2x8x8xbf16>
    "tpu.trace_start"() <{level = 10 : i32, message = "btd,bsd->bts"}> : () -> ()
    %cst_26 = arith.constant dense<0.000000e+00> : vector<2x8x8xf32>
    %104 = tpu.matmul %99, %101, %cst_26 {dimension_numbers = #tpu.dot_dimension_numbers<[2], [2], [1], [1], [0, 0, 0, 1, 1, 1], [0], [0]>} : vector<2x8x8xbf16>, vector<2x8x8xbf16>, vector<2x8x8xf32> -> vector<2x8x8xf32>
    "tpu.trace_stop"() : () -> ()
    %cst_27 = arith.constant dense<0xFF800000> : vector<2x8xf32>
    %105 = vector.multi_reduction <maximumf>, %104, %cst_27 [2] : vector<2x8x8xf32> to vector<2x8xf32>
    %106 = vector.shape_cast %105 : vector<2x8xf32> to vector<2x8x1xf32>
    %107 = vector.broadcast %106 : vector<2x8x1xf32> to vector<2x8x8xf32>
    %108 = arith.subf %104, %107 : vector<2x8x8xf32>
    %109 = math.exp %108 : vector<2x8x8xf32>
    %cst_28 = arith.constant dense<0.000000e+00> : vector<2x8xf32>
    %110 = vector.multi_reduction <add>, %109, %cst_28 [2] : vector<2x8x8xf32> to vector<2x8xf32>
    %111 = vector.shape_cast %110 : vector<2x8xf32> to vector<2x8x1xf32>
    %112 = tpu.reciprocal %111 {approx = true} : vector<2x8x1xf32> -> vector<2x8x1xf32>
    %113 = vector.broadcast %112 : vector<2x8x1xf32> to vector<2x8x8xf32>
    %114 = arith.mulf %109, %113 : vector<2x8x8xf32>
    %115 = arith.truncf %114 : vector<2x8x8xf32> to vector<2x8x8xbf16>
    "tpu.trace_start"() <{level = 10 : i32, message = "bts,bsd->btd"}> : () -> ()
    %cst_29 = arith.constant dense<0.000000e+00> : vector<2x8x8xf32>
    %116 = tpu.matmul %115, %103, %cst_29 {dimension_numbers = #tpu.dot_dimension_numbers<[2], [1], [1], [2], [0, 0, 0, 1, 1, 2], [0], [0]>} : vector<2x8x8xbf16>, vector<2x8x8xbf16>, vector<2x8x8xf32> -> vector<2x8x8xf32>
    "tpu.trace_stop"() : () -> ()
    %117 = vector.shape_cast %116 : vector<2x8x8xf32> to vector<16x8xf32>
    %118 = arith.truncf %117 : vector<16x8xf32> to vector<16x8xbf16>
    %119 = vector.extract_strided_slice %17 {offsets = [16, 0], sizes = [8, 32], strides = [1, 1]} : vector<32x32xbf16> to vector<8x32xbf16>
    %cst_30 = arith.constant dense<0.000000e+00> : vector<16x32xf32>
    %120 = tpu.matmul %118, %119, %cst_30 {dimension_numbers = #tpu.dot_dimension_numbers<[1], [0], [0], [1], [0, 0, 1, 1], [], []>} : vector<16x8xbf16>, vector<8x32xbf16>, vector<16x32xf32> -> vector<16x32xf32>
    %121 = arith.addf %97, %120 : vector<16x32xf32>
    %122 = vector.extract_strided_slice %47 {offsets = [0, 24], sizes = [16, 8], strides = [1, 1]} : vector<16x96xbf16> to vector<16x8xbf16>
    %123 = vector.shape_cast %122 : vector<16x8xbf16> to vector<2x8x8xbf16>
    %124 = vector.extract_strided_slice %47 {offsets = [0, 56], sizes = [16, 8], strides = [1, 1]} : vector<16x96xbf16> to vector<16x8xbf16>
    %125 = vector.shape_cast %124 : vector<16x8xbf16> to vector<2x8x8xbf16>
    %126 = vector.extract_strided_slice %47 {offsets = [0, 88], sizes = [16, 8], strides = [1, 1]} : vector<16x96xbf16> to vector<16x8xbf16>
    %127 = vector.shape_cast %126 : vector<16x8xbf16> to vector<2x8x8xbf16>
    "tpu.trace_start"() <{level = 10 : i32, message = "btd,bsd->bts"}> : () -> ()
    %cst_31 = arith.constant dense<0.000000e+00> : vector<2x8x8xf32>
    %128 = tpu.matmul %123, %125, %cst_31 {dimension_numbers = #tpu.dot_dimension_numbers<[2], [2], [1], [1], [0, 0, 0, 1, 1, 1], [0], [0]>} : vector<2x8x8xbf16>, vector<2x8x8xbf16>, vector<2x8x8xf32> -> vector<2x8x8xf32>
    "tpu.trace_stop"() : () -> ()
    %cst_32 = arith.constant dense<0xFF800000> : vector<2x8xf32>
    %129 = vector.multi_reduction <maximumf>, %128, %cst_32 [2] : vector<2x8x8xf32> to vector<2x8xf32>
    %130 = vector.shape_cast %129 : vector<2x8xf32> to vector<2x8x1xf32>
    %131 = vector.broadcast %130 : vector<2x8x1xf32> to vector<2x8x8xf32>
    %132 = arith.subf %128, %131 : vector<2x8x8xf32>
    %133 = math.exp %132 : vector<2x8x8xf32>
    %cst_33 = arith.constant dense<0.000000e+00> : vector<2x8xf32>
    %134 = vector.multi_reduction <add>, %133, %cst_33 [2] : vector<2x8x8xf32> to vector<2x8xf32>
    %135 = vector.shape_cast %134 : vector<2x8xf32> to vector<2x8x1xf32>
    %136 = tpu.reciprocal %135 {approx = true} : vector<2x8x1xf32> -> vector<2x8x1xf32>
    %137 = vector.broadcast %136 : vector<2x8x1xf32> to vector<2x8x8xf32>
    %138 = arith.mulf %133, %137 : vector<2x8x8xf32>
    %139 = arith.truncf %138 : vector<2x8x8xf32> to vector<2x8x8xbf16>
    "tpu.trace_start"() <{level = 10 : i32, message = "bts,bsd->btd"}> : () -> ()
    %cst_34 = arith.constant dense<0.000000e+00> : vector<2x8x8xf32>
    %140 = tpu.matmul %139, %127, %cst_34 {dimension_numbers = #tpu.dot_dimension_numbers<[2], [1], [1], [2], [0, 0, 0, 1, 1, 2], [0], [0]>} : vector<2x8x8xbf16>, vector<2x8x8xbf16>, vector<2x8x8xf32> -> vector<2x8x8xf32>
    "tpu.trace_stop"() : () -> ()
    %141 = vector.shape_cast %140 : vector<2x8x8xf32> to vector<16x8xf32>
    %142 = arith.truncf %141 : vector<16x8xf32> to vector<16x8xbf16>
    %143 = vector.extract_strided_slice %17 {offsets = [24, 0], sizes = [8, 32], strides = [1, 1]} : vector<32x32xbf16> to vector<8x32xbf16>
    %cst_35 = arith.constant dense<0.000000e+00> : vector<16x32xf32>
    %144 = tpu.matmul %142, %143, %cst_35 {dimension_numbers = #tpu.dot_dimension_numbers<[1], [0], [0], [1], [0, 0, 1, 1], [], []>} : vector<16x8xbf16>, vector<8x32xbf16>, vector<16x32xf32> -> vector<16x32xf32>
    %145 = arith.addf %121, %144 : vector<16x32xf32>
    %146 = arith.addf %3, %145 : vector<16x32xf32>
    %cst_36 = arith.constant dense<0.000000e+00> : vector<16xf32>
    %147 = vector.multi_reduction <add>, %146, %cst_36 [1] : vector<16x32xf32> to vector<16xf32>
    %148 = vector.shape_cast %147 : vector<16xf32> to vector<16x1xf32>
    %cst_37 = arith.constant 3.200000e+01 : f32
    %149 = vector.broadcast %cst_37 : f32 to vector<16x1xf32>
    %150 = arith.divf %148, %149 : vector<16x1xf32>
    %151 = vector.broadcast %150 : vector<16x1xf32> to vector<16x32xf32>
    %152 = arith.subf %146, %151 : vector<16x32xf32>
    %153 = arith.mulf %152, %152 : vector<16x32xf32>
    %cst_38 = arith.constant dense<0.000000e+00> : vector<16xf32>
    %154 = vector.multi_reduction <add>, %153, %cst_38 [1] : vector<16x32xf32> to vector<16xf32>
    %155 = vector.shape_cast %154 : vector<16xf32> to vector<16x1xf32>
    %cst_39 = arith.constant 3.200000e+01 : f32
    %156 = vector.broadcast %cst_39 : f32 to vector<16x1xf32>
    %157 = arith.divf %155, %156 : vector<16x1xf32>
    %158 = vector.broadcast %150 : vector<16x1xf32> to vector<16x32xf32>
    %159 = arith.subf %146, %158 : vector<16x32xf32>
    %cst_40 = arith.constant 9.99999974E-6 : f32
    %160 = vector.broadcast %cst_40 : f32 to vector<16x1xf32>
    %161 = arith.addf %157, %160 : vector<16x1xf32>
    %162 = math.rsqrt %161 : vector<16x1xf32>
    %163 = vector.broadcast %162 : vector<16x1xf32> to vector<16x32xf32>
    %164 = arith.mulf %159, %163 : vector<16x32xf32>
    %165 = vector.broadcast %8 : vector<1x32xf32> to vector<16x32xf32>
    %166 = arith.mulf %164, %165 : vector<16x32xf32>
    %167 = vector.broadcast %9 : vector<1x32xf32> to vector<16x32xf32>
    %168 = arith.addf %166, %167 : vector<16x32xf32>
    %169 = arith.truncf %168 : vector<16x32xf32> to vector<16x32xbf16>
    %cst_41 = arith.constant dense<0.000000e+00> : vector<16x128xf32>
    %170 = tpu.matmul %169, %18, %cst_41 {dimension_numbers = #tpu.dot_dimension_numbers<[1], [0], [0], [1], [0, 0, 1, 1], [], []>} : vector<16x32xbf16>, vector<32x128xbf16>, vector<16x128xf32> -> vector<16x128xf32>
    %171 = vector.broadcast %12 : vector<1x128xf32> to vector<16x128xf32>
    %172 = arith.addf %170, %171 : vector<16x128xf32>
    %cst_42 = arith.constant 0.000000e+00 : f32
    %173 = vector.broadcast %cst_42 : f32 to vector<16x128xf32>
    %174 = arith.maximumf %172, %173 : vector<16x128xf32>
    %175 = arith.truncf %174 : vector<16x128xf32> to vector<16x128xbf16>
    %cst_43 = arith.constant dense<0.000000e+00> : vector<16x32xf32>
    %176 = tpu.matmul %175, %20, %cst_43 {dimension_numbers = #tpu.dot_dimension_numbers<[1], [0], [0], [1], [0, 0, 1, 1], [], []>} : vector<16x128xbf16>, vector<128x32xbf16>, vector<16x32xf32> -> vector<16x32xf32>
    %177 = vector.broadcast %13 : vector<1x32xf32> to vector<16x32xf32>
    %178 = arith.addf %176, %177 : vector<16x32xf32>
    %179 = arith.addf %146, %178 : vector<16x32xf32>
    %c0_44 = arith.constant 0 : index
    %c0_45 = arith.constant 0 : index
    %180 = vector.load %arg5[%c0_44, %c0_45] : memref<16x32xf32, #tpu.memory_space<vmem>>, vector<16x32xf32>
    tpu.vector_store %arg5[%c0_44, %c0_45], %179 {strides = array<i32>} : memref<16x32xf32, #tpu.memory_space<vmem>>, vector<16x32xf32>,
    return
  }
  func.func @transform_0(%arg0: i32) -> (i32, i32) {
    %c0_i32 = arith.constant 0 : i32
    %c0_i32_0 = arith.constant 0 : i32
    %c0_i32_1 = arith.constant 0 : i32
    return %c0_i32, %c0_i32_0 : i32, i32
  }
  func.func @transform_1(%arg0: i32) -> (i32, i32, i32) {
    %c0_i32 = arith.constant 0 : i32
    %c0_i32_0 = arith.constant 0 : i32
    %c0_i32_1 = arith.constant 0 : i32
    return %arg0, %c0_i32, %c0_i32_0 : i32, i32, i32
  }
  func.func @transform_2(%arg0: i32) -> (i32, i32, i32) {
    %c0_i32 = arith.constant 0 : i32
    %c0_i32_0 = arith.constant 0 : i32
    %c0_i32_1 = arith.constant 0 : i32
    return %arg0, %c0_i32, %c0_i32_0 : i32, i32, i32
  }
  func.func @transform_3(%arg0: i32) -> (i32, i32, i32) {
    %c0_i32 = arith.constant 0 : i32
    %c0_i32_0 = arith.constant 0 : i32
    %c0_i32_1 = arith.constant 0 : i32
    return %arg0, %c0_i32, %c0_i32_0 : i32, i32, i32
  }
  func.func @transform_4(%arg0: i32) -> (i32, i32) {
    %c0_i32 = arith.constant 0 : i32
    %c0_i32_0 = arith.constant 0 : i32
    %c0_i32_1 = arith.constant 0 : i32
    return %c0_i32, %c0_i32_0 : i32, i32
  }
}

</mosaic_0001>

<llo_original>
// kernel: tpu_custom_call.1
$region0: #{tpu_custom_call.1}
  #allocation0 [shape = 'u32[]', space=smem, size = 0x4, offset = 0x4, fixed_abs, tag = 'smem constant byte address 0x4 - core index']
  #allocation1 [shape = 'u32[144,128]{1,0:T(1,128)}', space=vmem, size = 0x12000, scoped, tag = 'internal scratch']
  %s0 = inlined_call_operand.vmem [shape: f32[16,32], index: 0, kind: input, shape index: {}]
  %s1 = inlined_call_operand.vmem [shape: bf16[1,32,256], index: 1, kind: input, shape index: {}]
  %s2 = inlined_call_operand.vmem [shape: bf16[1,128,32], index: 2, kind: input, shape index: {}]
  %s3 = inlined_call_operand.vmem [shape: f32[1,8,128], index: 3, kind: input, shape index: {}]
  %s4 = inlined_call_operand.hbm [shape: f32[16,32], index: 4, kind: output, shape index: {}]
  %s5 = sld [smem:[#allocation0]]
  $region30: #{tpu_custom_call.1} parent=0
    _
  %s7 = ssub.s32 1, %s5
  %s8 = scalar_select 0, %s7, %s5
  $region1: #{tpu_custom_call.1} parent=0
    #allocation2 [shape = 'u8[8192]{0}', space=vmem, size = 0x2000, scoped, tag = 'output window, operand 0, single buffered']
    #allocation3 [shape = 's32[1]{0}', space=sflag, size = 0x4, scoped, tag = 'scoped memory for tpu_custom_call.1']
    %9 = vsyncpa [#allocation3], 0
    // Predicated region
    $region2: #{tpu_custom_call.1} parent=1 // pred_check
      _
    $region3: #{tpu_custom_call.1} parent=1 // pred_check_branch
      %11 = sbr.rel (0) target = $region5
    $region4: #{tpu_custom_call.1} parent=1 // pred_region
      _
    $region5: #{tpu_custom_call.1} parent=1 // pred_fallthru
      _
    // Predicated region
    $region6: #{tpu_custom_call.1} parent=1 // pred_check
      _
    $region7: #{tpu_custom_call.1} parent=1 // pred_check_branch
      %13 = sbr.rel (0) target = $region9
    $region8: #{tpu_custom_call.1} parent=1 // pred_region
      _
    $region9: #{tpu_custom_call.1} parent=1 // pred_fallthru
      _
    // Predicated region
    $region10: #{tpu_custom_call.1} parent=1 // pred_check
      _
    $region11: #{tpu_custom_call.1} parent=1 // pred_check_branch
      %15 = sbr.rel (0) target = $region13
    $region12: #{tpu_custom_call.1} parent=1 // pred_region
      _
    $region13: #{tpu_custom_call.1} parent=1 // pred_fallthru
      _
    // Predicated region
    $region14: #{tpu_custom_call.1} parent=1 // pred_check
      _
    $region15: #{tpu_custom_call.1} parent=1 // pred_check_branch
      %17 = sbr.rel (0) target = $region17
    $region16: #{tpu_custom_call.1} parent=1 // pred_region
      _
    $region17: #{tpu_custom_call.1} parent=1 // pred_fallthru
      _
    %p19 = scmp.eq.s32.totalorder 0, 0
    // Predicated region
    $region18: #{tpu_custom_call.1} parent=1 // pred_check
      %p20 = pneg %p19
    $region19: #{tpu_custom_call.1} parent=1 // pred_check_branch
      %22 = sbr.rel (%p20) target = $region21
    $region20: #{tpu_custom_call.1} parent=1 // pred_region
      %v23 = vld [vmem:[%s0] sm:$0xff]
      %v24 = vld [vmem:[%s0 + $0x8] sm:$0xff]
      %vm25 = vcmask 261120
      %26 = vst.msk [vmem:[#allocation2] sm:$0xff] %vm25, %v23
      %27 = vst.msk [vmem:[#allocation2 + $0x8] sm:$0xff] %vm25, %v24
    $region21: #{tpu_custom_call.1} parent=1 // pred_fallthru
      _
    %v28 = vld [vmem:[#allocation2] sm:$0xff]
    %v29 = vld [vmem:[#allocation2 + $0x8] sm:$0xff]
    %v30 = vld [vmem:[%s3] sm:$0xff]
    %v31 = vld [vmem:[%s1] sm:$0xff]
    %v32 = vld [vmem:[%s1 + $0x8] sm:$0xff]
    %v33 = vld [vmem:[%s1 + $0x10] sm:$0xff]
    %v34 = vld [vmem:[%s1 + $0x18] sm:$0xff]
    %v35 = vld [vmem:[%s2] sm:$0xf]
    %v36 = vld [vmem:[%s2 + $0x4] sm:$0xf]
    %v37 = vld [vmem:[%s2 + $0x8] sm:$0xf]
    %v38 = vld [vmem:[%s2 + $0xc] sm:$0xf]
    %v39 = vld [vmem:[%s2 + $0x10] sm:$0xf]
    %v40 = vld [vmem:[%s2 + $0x14] sm:$0xf]
    %v41 = vld [vmem:[%s2 + $0x18] sm:$0xf]
    %v42 = vld [vmem:[%s2 + $0x1c] sm:$0xf]
    %v43 = vld [vmem:[%s2 + $0x20] sm:$0xf]
    %v44 = vld [vmem:[%s2 + $0x24] sm:$0xf]
    %v45 = vld [vmem:[%s2 + $0x28] sm:$0xf]
    %v46 = vld [vmem:[%s2 + $0x2c] sm:$0xf]
    %v47 = vld [vmem:[%s2 + $0x30] sm:$0xf]
    %v48 = vld [vmem:[%s2 + $0x34] sm:$0xf]
    %v49 = vld [vmem:[%s2 + $0x38] sm:$0xf]
    %v50 = vld [vmem:[%s2 + $0x3c] sm:$0xf]
    %vm51 = vcmask 261120
    %v52 = vsel %vm51, %v28, 0.0
    %53 = vadd.xlane.f32.xlu0 %v52
    %v54 = vpop.xlane.xlu0 %53
    %v55 = vsel %vm51, %v29, 0.0
    %56 = vadd.xlane.f32.xlu0 %v55
    %v57 = vpop.xlane.xlu0 %56
    %v58 = vrcp.pop 32.0
    %v59 = vmul.f32 %v54, %v58
    %v60 = vmul.f32 %v57, %v58
    %v61 = vsub.f32 %v28, %v59
    %v62 = vsub.f32 %v29, %v60
    %v63 = vmul.f32 %v61, %v61
    %v64 = vmul.f32 %v62, %v62
    %v65 = vsel %vm51, %v63, 0.0
    %66 = vadd.xlane.f32.xlu0 %v65
    %v67 = vpop.xlane.xlu0 %66
    %v68 = vsel %vm51, %v64, 0.0
    %69 = vadd.xlane.f32.xlu0 %v68
    %v70 = vpop.xlane.xlu0 %69
    %v71 = vmul.f32 %v67, %v58
    %v72 = vmul.f32 %v70, %v58
    %v73 = vadd.f32 %v71, 1e-05
    %v74 = vadd.f32 %v72, 1e-05
    %v75 = vrsqrt.pop %v73
    %v76 = vrsqrt.pop %v74
    %v77 = vmul.f32 %v61, %v75
    %v78 = vmul.f32 %v62, %v76
    %v79 = vlaneseq
    %v80 = vshrl.u32 %v79, 7
    %v81 = vsub.s32 0, %v80
    %v82 = vrot.slane %v30, %v81
    %v83 = vmul.f32 %v77, %v82
    %v84 = vmul.f32 %v78, %v82
    %v85 = vlaneseq
    %v86 = vshrl.u32 %v85, 7
    %v87 = vsub.s32 1, %v86
    %v88 = vrot.slane %v30, %v87
    %v89 = vadd.f32 %v83, %v88
    %v90 = vadd.f32 %v84, %v88
    %v91 = vpack.c.bf16 %v90, %v89
    %v92 = vlaneseq
    %v93 = vshrl.u32 %v92, 7
    %v94 = vsub.s32 4, %v93
    %v95 = vrot.slane %v30, %v94
    %v100 = vunpack.c.l.b16 %v31
    %v101 = vunpack.c.l.b16 %v32
    %v102 = vunpack.c.l.b16 %v33
    %v103 = vunpack.c.l.b16 %v34
    %v104 = vpack.c.b16 %v101, %v100
    %v105 = vpack.c.b16 %v103, %v102
    %v109 = vsel %vm51, %v91, 0
    %111 = vmatprep.subr.bf16.mxu0 0
    %112 = vmatpush1.bf16.msra.mxu0 0
    %113 = vmatprep.subr.bf16.mxu0 0
    %114 = vmatpush1.bf16.msra.mxu0 0
    %115 = vmatprep.subr.bf16.mxu0 0
    %116 = vmatpush1.bf16.msra.mxu0 0
    %117 = vmatprep.subr.bf16.mxu0 0
    %118 = vmatpush1.bf16.msra.mxu0 0
    %119 = vmatprep.subr.bf16.mxu0 0
    %120 = vmatpush1.bf16.msra.mxu0 0
    %121 = vmatprep.subr.bf16.mxu0 0
    %122 = vmatpush1.bf16.msra.mxu0 0
    %123 = vmatprep.subr.bf16.mxu0 0
    %124 = vmatpush1.bf16.msra.mxu0 %v105
    %125 = vmatprep.subr.bf16.mxu0 0
    %126 = vmatpush1.bf16.msra.mxu0 %v104
    %127 = vmatprep.subr.bf16.mxu0 0
    %128 = vmatpush2.bf16.msra.mxu0 0
    %129 = vmatprep.subr.bf16.mxu0 0
    %130 = vmatpush2.bf16.msra.mxu0 0
    %131 = vmatprep.subr.bf16.mxu0 0
    %132 = vmatpush2.bf16.msra.mxu0 0
    %133 = vmatprep.subr.bf16.mxu0 0
    %134 = vmatpush2.bf16.msra.mxu0 0
    %135 = vmatprep.subr.bf16.mxu0 0
    %136 = vmatpush2.bf16.msra.mxu0 0
    %137 = vmatprep.subr.bf16.mxu0 0
    %138 = vmatpush2.bf16.msra.mxu0 0
    %139 = vmatprep.subr.bf16.mxu0 0
    %140 = vmatpush2.bf16.msra.mxu0 0
    %141 = vmatprep.subr.bf16.mxu0 0
    %142 = vmatpush2.bf16.msra.mxu0 0
    %143 = vmatprep.mubr.bf16.mxu0 0
    %144 = vmatmul.mubr.bf16.gmra.mxu0 %v109
    %v145 = vpop.f32.mrf.mxu0
    %v146 = vadd.f32 %v95, %v145
    %v147 = vpop.f32.mrf.mxu0
    %v148 = vpop.f32.mrf.mxu0
    %v149 = vadd.f32 %v95, %v148
    %v150 = vpop.f32.mrf.mxu0
    %151 = vdwg.mxu0
    %v152 = vpack.c.bf16 %v149, %v146
    %v153 = vlaneseq
    %v154 = vshrl.u32 %v153, 7
    %v155 = vsub.s32 5, %v154
    %v156 = vrot.slane %v30, %v155
    %v158 = vunpack.c.l.b16 %v152
    %v159 = vunpack.c.h.b16 %v152
    %v160 = vpack.c.b16 %v158, %v158
    %v161 = vpack.c.b16 %v159, %v159
    %162 = vrot.lane.b32.xlu0 %v160, 96
    %v163 = vpop.permute.xlu0 %162
    %vm164 = vcmask 64512
    %v166 = vsel %vm164, %v160, 0
    %v169 = vsel %vm164, %v163, 0
    %171 = vmatprep.subr.bf16.mxu0 0
    %172 = vmatpush1.bf16.xpose.msra.mxu0 0
    %173 = vmatprep.subr.bf16.mxu0 0
    %174 = vmatpush1.bf16.xpose.msra.mxu0 0
    %175 = vmatprep.subr.bf16.mxu0 0
    %176 = vmatpush1.bf16.xpose.msra.mxu0 0
    %177 = vmatprep.subr.bf16.mxu0 0
    %178 = vmatpush1.bf16.xpose.msra.mxu0 0
    %179 = vmatprep.subr.bf16.mxu0 0
    %180 = vmatpush1.bf16.xpose.msra.mxu0 0
    %181 = vmatprep.subr.bf16.mxu0 0
    %182 = vmatpush1.bf16.xpose.msra.mxu0 0
    %183 = vmatprep.subr.bf16.mxu0 0
    %184 = vmatpush1.bf16.xpose.msra.mxu0 0
    %185 = vmatprep.subr.bf16.mxu0 0
    %186 = vmatpush1.bf16.xpose.msra.mxu0 %v169
    %187 = vmatprep.subr.bf16.mxu0 0
    %188 = vmatpush2.bf16.xpose.msra.mxu0 0
    %189 = vmatprep.subr.bf16.mxu0 0
    %190 = vmatpush2.bf16.xpose.msra.mxu0 0
    %191 = vmatprep.subr.bf16.mxu0 0
    %192 = vmatpush2.bf16.xpose.msra.mxu0 0
    %193 = vmatprep.subr.bf16.mxu0 0
    %194 = vmatpush2.bf16.xpose.msra.mxu0 0
    %195 = vmatprep.subr.bf16.mxu0 0
    %196 = vmatpush2.bf16.xpose.msra.mxu0 0
    %197 = vmatprep.subr.bf16.mxu0 0
    %198 = vmatpush2.bf16.xpose.msra.mxu0 0
    %199 = vmatprep.subr.bf16.mxu0 0
    %200 = vmatpush2.bf16.xpose.msra.mxu0 0
    %201 = vmatprep.subr.bf16.mxu0 0
    %202 = vmatpush2.bf16.xpose.msra.mxu0 0
    %203 = vmatprep.mubr.bf16.mxu0 0
    %204 = vmatmul.mubr.bf16.gmra.mxu0 %v166
    %v205 = vpop.f32.mrf.mxu0
    %v206 = vadd.f32 0.0, %v205
    %v207 = vpop.f32.mrf.mxu0
    %v208 = vpop.f32.mrf.mxu0
    %v209 = vpop.f32.mrf.mxu0
    %210 = vdwg.mxu0
    %211 = vrot.lane.b32.xlu0 %v161, 96
    %v212 = vpop.permute.xlu0 %211
    %v214 = vsel %vm164, %v161, 0
    %v217 = vsel %vm164, %v212, 0
    %219 = vmatprep.subr.bf16.mxu0 0
    %220 = vmatpush1.bf16.xpose.msra.mxu0 0
    %221 = vmatprep.subr.bf16.mxu0 0
    %222 = vmatpush1.bf16.xpose.msra.mxu0 0
    %223 = vmatprep.subr.bf16.mxu0 0
    %224 = vmatpush1.bf16.xpose.msra.mxu0 0
    %225 = vmatprep.subr.bf16.mxu0 0
    %226 = vmatpush1.bf16.xpose.msra.mxu0 0
    %227 = vmatprep.subr.bf16.mxu0 0
    %228 = vmatpush1.bf16.xpose.msra.mxu0 0
    %229 = vmatprep.subr.bf16.mxu0 0
    %230 = vmatpush1.bf16.xpose.msra.mxu0 0
    %231 = vmatprep.subr.bf16.mxu0 0
    %232 = vmatpush1.bf16.xpose.msra.mxu0 0
    %233 = vmatprep.subr.bf16.mxu0 0
    %234 = vmatpush1.bf16.xpose.msra.mxu0 %v217
    %235 = vmatprep.subr.bf16.mxu0 0
    %236 = vmatpush2.bf16.xpose.msra.mxu0 0
    %237 = vmatprep.subr.bf16.mxu0 0
    %238 = vmatpush2.bf16.xpose.msra.mxu0 0
    %239 = vmatprep.subr.bf16.mxu0 0
    %240 = vmatpush2.bf16.xpose.msra.mxu0 0
    %241 = vmatprep.subr.bf16.mxu0 0
    %242 = vmatpush2.bf16.xpose.msra.mxu0 0
    %243 = vmatprep.subr.bf16.mxu0 0
    %244 = vmatpush2.bf16.xpose.msra.mxu0 0
    %245 = vmatprep.subr.bf16.mxu0 0
    %246 = vmatpush2.bf16.xpose.msra.mxu0 0
    %247 = vmatprep.subr.bf16.mxu0 0
    %248 = vmatpush2.bf16.xpose.msra.mxu0 0
    %249 = vmatprep.subr.bf16.mxu0 0
    %250 = vmatpush2.bf16.xpose.msra.mxu0 0
    %251 = vmatprep.mubr.bf16.mxu0 0
    %252 = vmatmul.mubr.bf16.gmra.mxu0 %v214
    %v253 = vpop.f32.mrf.mxu0
    %v254 = vadd.f32 0.0, %v253
    %v255 = vpop.f32.mrf.mxu0
    %v256 = vpop.f32.mrf.mxu0
    %v257 = vpop.f32.mrf.mxu0
    %258 = vdwg.mxu0
    %v259 = vsel %vm164, %v206, -inf
    %260 = vmax.xlane.f32.xlu0 %v259
    %v261 = vpop.xlane.xlu0 %260
    %v262 = vsel %vm164, %v254, -inf
    %263 = vmax.xlane.f32.xlu0 %v262
    %v264 = vpop.xlane.xlu0 %263
    %v265 = vsub.f32 %v206, %v261
    %v266 = vsub.f32 %v254, %v264
    %v267 = vmul.f32 %v265, 1.442695
    %v268 = vpow.pop %v267
    %v269 = vmul.f32 %v266, 1.442695
    %v270 = vpow.pop %v269
    %v271 = vsel %vm164, %v268, 0.0
    %272 = vadd.xlane.f32.xlu0 %v271
    %v273 = vpop.xlane.xlu0 %272
    %v274 = vsel %vm164, %v270, 0.0
    %275 = vadd.xlane.f32.xlu0 %v274
    %v276 = vpop.xlane.xlu0 %275
    %v277 = vrcp.pop %v273
    %v278 = vrcp.pop %v276
    %v279 = vmul.f32 %v268, %v277
    %v280 = vmul.f32 %v270, %v278
    %v281 = vpack.c.bf16 %v279, %v279
    %v282 = vpack.c.bf16 %v280, %v280
    %283 = vrot.lane.b32.xlu0 %v160, 64
    %v284 = vpop.permute.xlu0 %283
    %v286 = vsel %vm164, %v281, 0
    %vm288 = vcmask 1043456
    %v290 = vsel %vm288, %v284, 0
    %292 = vmatprep.subr.bf16.mxu0 0
    %293 = vmatpush1.bf16.msra.mxu0 0
    %294 = vmatprep.subr.bf16.mxu0 0
    %295 = vmatpush1.bf16.msra.mxu0 0
    %296 = vmatprep.subr.bf16.mxu0 0
    %297 = vmatpush1.bf16.msra.mxu0 0
    %298 = vmatprep.subr.bf16.mxu0 0
    %299 = vmatpush1.bf16.msra.mxu0 0
    %300 = vmatprep.subr.bf16.mxu0 0
    %301 = vmatpush1.bf16.msra.mxu0 0
    %302 = vmatprep.subr.bf16.mxu0 0
    %303 = vmatpush1.bf16.msra.mxu0 0
    %304 = vmatprep.subr.bf16.mxu0 0
    %305 = vmatpush1.bf16.msra.mxu0 0
    %306 = vmatprep.subr.bf16.mxu0 0
    %307 = vmatpush1.bf16.msra.mxu0 %v290
    %308 = vmatprep.subr.bf16.mxu0 0
    %309 = vmatpush2.bf16.msra.mxu0 0
    %310 = vmatprep.subr.bf16.mxu0 0
    %311 = vmatpush2.bf16.msra.mxu0 0
    %312 = vmatprep.subr.bf16.mxu0 0
    %313 = vmatpush2.bf16.msra.mxu0 0
    %314 = vmatprep.subr.bf16.mxu0 0
    %315 = vmatpush2.bf16.msra.mxu0 0
    %316 = vmatprep.subr.bf16.mxu0 0
    %317 = vmatpush2.bf16.msra.mxu0 0
    %318 = vmatprep.subr.bf16.mxu0 0
    %319 = vmatpush2.bf16.msra.mxu0 0
    %320 = vmatprep.subr.bf16.mxu0 0
    %321 = vmatpush2.bf16.msra.mxu0 0
    %322 = vmatprep.subr.bf16.mxu0 0
    %323 = vmatpush2.bf16.msra.mxu0 0
    %324 = vmatprep.mubr.bf16.mxu0 0
    %325 = vmatmul.mubr.bf16.gmra.mxu0 %v286
    %v326 = vpop.f32.mrf.mxu0
    %v327 = vadd.f32 0.0, %v326
    %v328 = vpop.f32.mrf.mxu0
    %v329 = vpop.f32.mrf.mxu0
    %v330 = vpop.f32.mrf.mxu0
    %331 = vdwg.mxu0
    %332 = vrot.lane.b32.xlu0 %v161, 64
    %v333 = vpop.permute.xlu0 %332
    %v335 = vsel %vm164, %v282, 0
    %v338 = vsel %vm288, %v333, 0
    %340 = vmatprep.subr.bf16.mxu0 0
    %341 = vmatpush1.bf16.msra.mxu0 0
    %342 = vmatprep.subr.bf16.mxu0 0
    %343 = vmatpush1.bf16.msra.mxu0 0
    %344 = vmatprep.subr.bf16.mxu0 0
    %345 = vmatpush1.bf16.msra.mxu0 0
    %346 = vmatprep.subr.bf16.mxu0 0
    %347 = vmatpush1.bf16.msra.mxu0 0
    %348 = vmatprep.subr.bf16.mxu0 0
    %349 = vmatpush1.bf16.msra.mxu0 0
    %350 = vmatprep.subr.bf16.mxu0 0
    %351 = vmatpush1.bf16.msra.mxu0 0
    %352 = vmatprep.subr.bf16.mxu0 0
    %353 = vmatpush1.bf16.msra.mxu0 0
    %354 = vmatprep.subr.bf16.mxu0 0
    %355 = vmatpush1.bf16.msra.mxu0 %v338
    %356 = vmatprep.subr.bf16.mxu0 0
    %357 = vmatpush2.bf16.msra.mxu0 0
    %358 = vmatprep.subr.bf16.mxu0 0
    %359 = vmatpush2.bf16.msra.mxu0 0
    %360 = vmatprep.subr.bf16.mxu0 0
    %361 = vmatpush2.bf16.msra.mxu0 0
    %362 = vmatprep.subr.bf16.mxu0 0
    %363 = vmatpush2.bf16.msra.mxu0 0
    %364 = vmatprep.subr.bf16.mxu0 0
    %365 = vmatpush2.bf16.msra.mxu0 0
    %366 = vmatprep.subr.bf16.mxu0 0
    %367 = vmatpush2.bf16.msra.mxu0 0
    %368 = vmatprep.subr.bf16.mxu0 0
    %369 = vmatpush2.bf16.msra.mxu0 0
    %370 = vmatprep.subr.bf16.mxu0 0
    %371 = vmatpush2.bf16.msra.mxu0 0
    %372 = vmatprep.mubr.bf16.mxu0 0
    %373 = vmatmul.mubr.bf16.gmra.mxu0 %v335
    %v374 = vpop.f32.mrf.mxu0
    %v375 = vadd.f32 0.0, %v374
    %v376 = vpop.f32.mrf.mxu0
    %v377 = vpop.f32.mrf.mxu0
    %v378 = vpop.f32.mrf.mxu0
    %379 = vdwg.mxu0
    %v380 = vpack.c.bf16 %v375, %v327
    %v381 = vpack.c.b16 %v100, %v100
    %382 = vrot.lane.b32.xlu0 %v381, 32
    %v383 = vpop.permute.xlu0 %382
    %v385 = vsel %vm164, %v380, 0
    %v388 = vsel %vm288, %v383, 0
    %390 = vmatprep.subr.bf16.mxu0 0
    %391 = vmatpush1.bf16.msra.mxu0 0
    %392 = vmatprep.subr.bf16.mxu0 0
    %393 = vmatpush1.bf16.msra.mxu0 0
    %394 = vmatprep.subr.bf16.mxu0 0
    %395 = vmatpush1.bf16.msra.mxu0 0
    %396 = vmatprep.subr.bf16.mxu0 0
    %397 = vmatpush1.bf16.msra.mxu0 0
    %398 = vmatprep.subr.bf16.mxu0 0
    %399 = vmatpush1.bf16.msra.mxu0 0
    %400 = vmatprep.subr.bf16.mxu0 0
    %401 = vmatpush1.bf16.msra.mxu0 0
    %402 = vmatprep.subr.bf16.mxu0 0
    %403 = vmatpush1.bf16.msra.mxu0 0
    %404 = vmatprep.subr.bf16.mxu0 0
    %405 = vmatpush1.bf16.msra.mxu0 %v388
    %406 = vmatprep.subr.bf16.mxu0 0
    %407 = vmatpush2.bf16.msra.mxu0 0
    %408 = vmatprep.subr.bf16.mxu0 0
    %409 = vmatpush2.bf16.msra.mxu0 0
    %410 = vmatprep.subr.bf16.mxu0 0
    %411 = vmatpush2.bf16.msra.mxu0 0
    %412 = vmatprep.subr.bf16.mxu0 0
    %413 = vmatpush2.bf16.msra.mxu0 0
    %414 = vmatprep.subr.bf16.mxu0 0
    %415 = vmatpush2.bf16.msra.mxu0 0
    %416 = vmatprep.subr.bf16.mxu0 0
    %417 = vmatpush2.bf16.msra.mxu0 0
    %418 = vmatprep.subr.bf16.mxu0 0
    %419 = vmatpush2.bf16.msra.mxu0 0
    %420 = vmatprep.subr.bf16.mxu0 0
    %421 = vmatpush2.bf16.msra.mxu0 0
    %422 = vmatprep.mubr.bf16.mxu0 0
    %423 = vmatmul.mubr.bf16.gmra.mxu0 %v385
    %v424 = vpop.f32.mrf.mxu0
    %v425 = vadd.f32 0.0, %v424
    %v426 = vpop.f32.mrf.mxu0
    %v427 = vpop.f32.mrf.mxu0
    %v428 = vadd.f32 0.0, %v427
    %v429 = vpop.f32.mrf.mxu0
    %430 = vdwg.mxu0
    %v431 = vadd.f32 %v156, %v425
    %v432 = vadd.f32 %v156, %v428
    %433 = vrot.lane.b32.xlu0 %v160, 120
    %v434 = vpop.permute.xlu0 %433
    %435 = vrot.lane.b32.xlu0 %v160, 88
    %v436 = vpop.permute.xlu0 %435
    %v438 = vsel %vm164, %v434, 0
    %v441 = vsel %vm164, %v436, 0
    %443 = vmatprep.subr.bf16.mxu0 0
    %444 = vmatpush1.bf16.xpose.msra.mxu0 0
    %445 = vmatprep.subr.bf16.mxu0 0
    %446 = vmatpush1.bf16.xpose.msra.mxu0 0
    %447 = vmatprep.subr.bf16.mxu0 0
    %448 = vmatpush1.bf16.xpose.msra.mxu0 0
    %449 = vmatprep.subr.bf16.mxu0 0
    %450 = vmatpush1.bf16.xpose.msra.mxu0 0
    %451 = vmatprep.subr.bf16.mxu0 0
    %452 = vmatpush1.bf16.xpose.msra.mxu0 0
    %453 = vmatprep.subr.bf16.mxu0 0
    %454 = vmatpush1.bf16.xpose.msra.mxu0 0
    %455 = vmatprep.subr.bf16.mxu0 0
    %456 = vmatpush1.bf16.xpose.msra.mxu0 0
    %457 = vmatprep.subr.bf16.mxu0 0
    %458 = vmatpush1.bf16.xpose.msra.mxu0 %v441
    %459 = vmatprep.subr.bf16.mxu0 0
    %460 = vmatpush2.bf16.xpose.msra.mxu0 0
    %461 = vmatprep.subr.bf16.mxu0 0
    %462 = vmatpush2.bf16.xpose.msra.mxu0 0
    %463 = vmatprep.subr.bf16.mxu0 0
    %464 = vmatpush2.bf16.xpose.msra.mxu0 0
    %465 = vmatprep.subr.bf16.mxu0 0
    %466 = vmatpush2.bf16.xpose.msra.mxu0 0
    %467 = vmatprep.subr.bf16.mxu0 0
    %468 = vmatpush2.bf16.xpose.msra.mxu0 0
    %469 = vmatprep.subr.bf16.mxu0 0
    %470 = vmatpush2.bf16.xpose.msra.mxu0 0
    %471 = vmatprep.subr.bf16.mxu0 0
    %472 = vmatpush2.bf16.xpose.msra.mxu0 0
    %473 = vmatprep.subr.bf16.mxu0 0
    %474 = vmatpush2.bf16.xpose.msra.mxu0 0
    %475 = vmatprep.mubr.bf16.mxu0 0
    %476 = vmatmul.mubr.bf16.gmra.mxu0 %v438
    %v477 = vpop.f32.mrf.mxu0
    %v478 = vadd.f32 0.0, %v477
    %v479 = vpop.f32.mrf.mxu0
    %v480 = vpop.f32.mrf.mxu0
    %v481 = vpop.f32.mrf.mxu0
    %482 = vdwg.mxu0
    %483 = vrot.lane.b32.xlu0 %v161, 120
    %v484 = vpop.permute.xlu0 %483
    %485 = vrot.lane.b32.xlu0 %v161, 88
    %v486 = vpop.permute.xlu0 %485
    %v488 = vsel %vm164, %v484, 0
    %v491 = vsel %vm164, %v486, 0
    %493 = vmatprep.subr.bf16.mxu0 0
    %494 = vmatpush1.bf16.xpose.msra.mxu0 0
    %495 = vmatprep.subr.bf16.mxu0 0
    %496 = vmatpush1.bf16.xpose.msra.mxu0 0
    %497 = vmatprep.subr.bf16.mxu0 0
    %498 = vmatpush1.bf16.xpose.msra.mxu0 0
    %499 = vmatprep.subr.bf16.mxu0 0
    %500 = vmatpush1.bf16.xpose.msra.mxu0 0
    %501 = vmatprep.subr.bf16.mxu0 0
    %502 = vmatpush1.bf16.xpose.msra.mxu0 0
    %503 = vmatprep.subr.bf16.mxu0 0
    %504 = vmatpush1.bf16.xpose.msra.mxu0 0
    %505 = vmatprep.subr.bf16.mxu0 0
    %506 = vmatpush1.bf16.xpose.msra.mxu0 0
    %507 = vmatprep.subr.bf16.mxu0 0
    %508 = vmatpush1.bf16.xpose.msra.mxu0 %v491
    %509 = vmatprep.subr.bf16.mxu0 0
    %510 = vmatpush2.bf16.xpose.msra.mxu0 0
    %511 = vmatprep.subr.bf16.mxu0 0
    %512 = vmatpush2.bf16.xpose.msra.mxu0 0
    %513 = vmatprep.subr.bf16.mxu0 0
    %514 = vmatpush2.bf16.xpose.msra.mxu0 0
    %515 = vmatprep.subr.bf16.mxu0 0
    %516 = vmatpush2.bf16.xpose.msra.mxu0 0
    %517 = vmatprep.subr.bf16.mxu0 0
    %518 = vmatpush2.bf16.xpose.msra.mxu0 0
    %519 = vmatprep.subr.bf16.mxu0 0
    %520 = vmatpush2.bf16.xpose.msra.mxu0 0
    %521 = vmatprep.subr.bf16.mxu0 0
    %522 = vmatpush2.bf16.xpose.msra.mxu0 0
    %523 = vmatprep.subr.bf16.mxu0 0
    %524 = vmatpush2.bf16.xpose.msra.mxu0 0
    %525 = vmatprep.mubr.bf16.mxu0 0
    %526 = vmatmul.mubr.bf16.gmra.mxu0 %v488
    %v527 = vpop.f32.mrf.mxu0
    %v528 = vadd.f32 0.0, %v527
    %v529 = vpop.f32.mrf.mxu0
    %v530 = vpop.f32.mrf.mxu0
    %v531 = vpop.f32.mrf.mxu0
    %532 = vdwg.mxu0
    %v533 = vsel %vm164, %v478, -inf
    %534 = vmax.xlane.f32.xlu0 %v533
    %v535 = vpop.xlane.xlu0 %534
    %v536 = vsel %vm164, %v528, -inf
    %537 = vmax.xlane.f32.xlu0 %v536
    %v538 = vpop.xlane.xlu0 %537
    %v539 = vsub.f32 %v478, %v535
    %v540 = vsub.f32 %v528, %v538
    %v541 = vmul.f32 %v539, 1.442695
    %v542 = vpow.pop %v541
    %v543 = vmul.f32 %v540, 1.442695
    %v544 = vpow.pop %v543
    %v545 = vsel %vm164, %v542, 0.0
    %546 = vadd.xlane.f32.xlu0 %v545
    %v547 = vpop.xlane.xlu0 %546
    %v548 = vsel %vm164, %v544, 0.0
    %549 = vadd.xlane.f32.xlu0 %v548
    %v550 = vpop.xlane.xlu0 %549
    %v551 = vrcp.pop %v547
    %v552 = vrcp.pop %v550
    %v553 = vmul.f32 %v542, %v551
    %v554 = vmul.f32 %v544, %v552
    %v555 = vpack.c.bf16 %v553, %v553
    %v556 = vpack.c.bf16 %v554, %v554
    %557 = vrot.lane.b32.xlu0 %v160, 56
    %v558 = vpop.permute.xlu0 %557
    %v560 = vsel %vm164, %v555, 0
    %v563 = vsel %vm288, %v558, 0
    %565 = vmatprep.subr.bf16.mxu0 0
    %566 = vmatpush1.bf16.msra.mxu0 0
    %567 = vmatprep.subr.bf16.mxu0 0
    %568 = vmatpush1.bf16.msra.mxu0 0
    %569 = vmatprep.subr.bf16.mxu0 0
    %570 = vmatpush1.bf16.msra.mxu0 0
    %571 = vmatprep.subr.bf16.mxu0 0
    %572 = vmatpush1.bf16.msra.mxu0 0
    %573 = vmatprep.subr.bf16.mxu0 0
    %574 = vmatpush1.bf16.msra.mxu0 0
    %575 = vmatprep.subr.bf16.mxu0 0
    %576 = vmatpush1.bf16.msra.mxu0 0
    %577 = vmatprep.subr.bf16.mxu0 0
    %578 = vmatpush1.bf16.msra.mxu0 0
    %579 = vmatprep.subr.bf16.mxu0 0
    %580 = vmatpush1.bf16.msra.mxu0 %v563
    %581 = vmatprep.subr.bf16.mxu0 0
    %582 = vmatpush2.bf16.msra.mxu0 0
    %583 = vmatprep.subr.bf16.mxu0 0
    %584 = vmatpush2.bf16.msra.mxu0 0
    %585 = vmatprep.subr.bf16.mxu0 0
    %586 = vmatpush2.bf16.msra.mxu0 0
    %587 = vmatprep.subr.bf16.mxu0 0
    %588 = vmatpush2.bf16.msra.mxu0 0
    %589 = vmatprep.subr.bf16.mxu0 0
    %590 = vmatpush2.bf16.msra.mxu0 0
    %591 = vmatprep.subr.bf16.mxu0 0
    %592 = vmatpush2.bf16.msra.mxu0 0
    %593 = vmatprep.subr.bf16.mxu0 0
    %594 = vmatpush2.bf16.msra.mxu0 0
    %595 = vmatprep.subr.bf16.mxu0 0
    %596 = vmatpush2.bf16.msra.mxu0 0
    %597 = vmatprep.mubr.bf16.mxu0 0
    %598 = vmatmul.mubr.bf16.gmra.mxu0 %v560
    %v599 = vpop.f32.mrf.mxu0
    %v600 = vadd.f32 0.0, %v599
    %v601 = vpop.f32.mrf.mxu0
    %v602 = vpop.f32.mrf.mxu0
    %v603 = vpop.f32.mrf.mxu0
    %604 = vdwg.mxu0
    %605 = vrot.lane.b32.xlu0 %v161, 56
    %v606 = vpop.permute.xlu0 %605
    %v608 = vsel %vm164, %v556, 0
    %v611 = vsel %vm288, %v606, 0
    %613 = vmatprep.subr.bf16.mxu0 0
    %614 = vmatpush1.bf16.msra.mxu0 0
    %615 = vmatprep.subr.bf16.mxu0 0
    %616 = vmatpush1.bf16.msra.mxu0 0
    %617 = vmatprep.subr.bf16.mxu0 0
    %618 = vmatpush1.bf16.msra.mxu0 0
    %619 = vmatprep.subr.bf16.mxu0 0
    %620 = vmatpush1.bf16.msra.mxu0 0
    %621 = vmatprep.subr.bf16.mxu0 0
    %622 = vmatpush1.bf16.msra.mxu0 0
    %623 = vmatprep.subr.bf16.mxu0 0
    %624 = vmatpush1.bf16.msra.mxu0 0
    %625 = vmatprep.subr.bf16.mxu0 0
    %626 = vmatpush1.bf16.msra.mxu0 0
    %627 = vmatprep.subr.bf16.mxu0 0
    %628 = vmatpush1.bf16.msra.mxu0 %v611
    %629 = vmatprep.subr.bf16.mxu0 0
    %630 = vmatpush2.bf16.msra.mxu0 0
    %631 = vmatprep.subr.bf16.mxu0 0
    %632 = vmatpush2.bf16.msra.mxu0 0
    %633 = vmatprep.subr.bf16.mxu0 0
    %634 = vmatpush2.bf16.msra.mxu0 0
    %635 = vmatprep.subr.bf16.mxu0 0
    %636 = vmatpush2.bf16.msra.mxu0 0
    %637 = vmatprep.subr.bf16.mxu0 0
    %638 = vmatpush2.bf16.msra.mxu0 0
    %639 = vmatprep.subr.bf16.mxu0 0
    %640 = vmatpush2.bf16.msra.mxu0 0
    %641 = vmatprep.subr.bf16.mxu0 0
    %642 = vmatpush2.bf16.msra.mxu0 0
    %643 = vmatprep.subr.bf16.mxu0 0
    %644 = vmatpush2.bf16.msra.mxu0 0
    %645 = vmatprep.mubr.bf16.mxu0 0
    %646 = vmatmul.mubr.bf16.gmra.mxu0 %v608
    %v647 = vpop.f32.mrf.mxu0
    %v648 = vadd.f32 0.0, %v647
    %v649 = vpop.f32.mrf.mxu0
    %v650 = vpop.f32.mrf.mxu0
    %v651 = vpop.f32.mrf.mxu0
    %652 = vdwg.mxu0
    %v653 = vpack.c.bf16 %v648, %v600
    %v654 = vpack.c.b16 %v101, %v101
    %655 = vrot.lane.b32.xlu0 %v654, 32
    %v656 = vpop.permute.xlu0 %655
    %v658 = vsel %vm164, %v653, 0
    %v661 = vsel %vm288, %v656, 0
    %663 = vmatprep.subr.bf16.mxu0 0
    %664 = vmatpush1.bf16.msra.mxu0 0
    %665 = vmatprep.subr.bf16.mxu0 0
    %666 = vmatpush1.bf16.msra.mxu0 0
    %667 = vmatprep.subr.bf16.mxu0 0
    %668 = vmatpush1.bf16.msra.mxu0 0
    %669 = vmatprep.subr.bf16.mxu0 0
    %670 = vmatpush1.bf16.msra.mxu0 0
    %671 = vmatprep.subr.bf16.mxu0 0
    %672 = vmatpush1.bf16.msra.mxu0 0
    %673 = vmatprep.subr.bf16.mxu0 0
    %674 = vmatpush1.bf16.msra.mxu0 0
    %675 = vmatprep.subr.bf16.mxu0 0
    %676 = vmatpush1.bf16.msra.mxu0 0
    %677 = vmatprep.subr.bf16.mxu0 0
    %678 = vmatpush1.bf16.msra.mxu0 %v661
    %679 = vmatprep.subr.bf16.mxu0 0
    %680 = vmatpush2.bf16.msra.mxu0 0
    %681 = vmatprep.subr.bf16.mxu0 0
    %682 = vmatpush2.bf16.msra.mxu0 0
    %683 = vmatprep.subr.bf16.mxu0 0
    %684 = vmatpush2.bf16.msra.mxu0 0
    %685 = vmatprep.subr.bf16.mxu0 0
    %686 = vmatpush2.bf16.msra.mxu0 0
    %687 = vmatprep.subr.bf16.mxu0 0
    %688 = vmatpush2.bf16.msra.mxu0 0
    %689 = vmatprep.subr.bf16.mxu0 0
    %690 = vmatpush2.bf16.msra.mxu0 0
    %691 = vmatprep.subr.bf16.mxu0 0
    %692 = vmatpush2.bf16.msra.mxu0 0
    %693 = vmatprep.subr.bf16.mxu0 0
    %694 = vmatpush2.bf16.msra.mxu0 0
    %695 = vmatprep.mubr.bf16.mxu0 0
    %696 = vmatmul.mubr.bf16.gmra.mxu0 %v658
    %v697 = vpop.f32.mrf.mxu0
    %v698 = vadd.f32 0.0, %v697
    %v699 = vpop.f32.mrf.mxu0
    %v700 = vpop.f32.mrf.mxu0
    %v701 = vadd.f32 0.0, %v700
    %v702 = vpop.f32.mrf.mxu0
    %703 = vdwg.mxu0
    %v704 = vadd.f32 %v431, %v698
    %v705 = vadd.f32 %v432, %v701
    %706 = vrot.lane.b32.xlu0 %v160, 112
    %v707 = vpop.permute.xlu0 %706
    %708 = vrot.lane.b32.xlu0 %v160, 80
    %v709 = vpop.permute.xlu0 %708
    %v711 = vsel %vm164, %v707, 0
    %v714 = vsel %vm164, %v709, 0
    %716 = vmatprep.subr.bf16.mxu0 0
    %717 = vmatpush1.bf16.xpose.msra.mxu0 0
    %718 = vmatprep.subr.bf16.mxu0 0
    %719 = vmatpush1.bf16.xpose.msra.mxu0 0
    %720 = vmatprep.subr.bf16.mxu0 0
    %721 = vmatpush1.bf16.xpose.msra.mxu0 0
    %722 = vmatprep.subr.bf16.mxu0 0
    %723 = vmatpush1.bf16.xpose.msra.mxu0 0
    %724 = vmatprep.subr.bf16.mxu0 0
    %725 = vmatpush1.bf16.xpose.msra.mxu0 0
    %726 = vmatprep.subr.bf16.mxu0 0
    %727 = vmatpush1.bf16.xpose.msra.mxu0 0
    %728 = vmatprep.subr.bf16.mxu0 0
    %729 = vmatpush1.bf16.xpose.msra.mxu0 0
    %730 = vmatprep.subr.bf16.mxu0 0
    %731 = vmatpush1.bf16.xpose.msra.mxu0 %v714
    %732 = vmatprep.subr.bf16.mxu0 0
    %733 = vmatpush2.bf16.xpose.msra.mxu0 0
    %734 = vmatprep.subr.bf16.mxu0 0
    %735 = vmatpush2.bf16.xpose.msra.mxu0 0
    %736 = vmatprep.subr.bf16.mxu0 0
    %737 = vmatpush2.bf16.xpose.msra.mxu0 0
    %738 = vmatprep.subr.bf16.mxu0 0
    %739 = vmatpush2.bf16.xpose.msra.mxu0 0
    %740 = vmatprep.subr.bf16.mxu0 0
    %741 = vmatpush2.bf16.xpose.msra.mxu0 0
    %742 = vmatprep.subr.bf16.mxu0 0
    %743 = vmatpush2.bf16.xpose.msra.mxu0 0
    %744 = vmatprep.subr.bf16.mxu0 0
    %745 = vmatpush2.bf16.xpose.msra.mxu0 0
    %746 = vmatprep.subr.bf16.mxu0 0
    %747 = vmatpush2.bf16.xpose.msra.mxu0 0
    %748 = vmatprep.mubr.bf16.mxu0 0
    %749 = vmatmul.mubr.bf16.gmra.mxu0 %v711
    %v750 = vpop.f32.mrf.mxu0
    %v751 = vadd.f32 0.0, %v750
    %v752 = vpop.f32.mrf.mxu0
    %v753 = vpop.f32.mrf.mxu0
    %v754 = vpop.f32.mrf.mxu0
    %755 = vdwg.mxu0
    %756 = vrot.lane.b32.xlu0 %v161, 112
    %v757 = vpop.permute.xlu0 %756
    %758 = vrot.lane.b32.xlu0 %v161, 80
    %v759 = vpop.permute.xlu0 %758
    %v761 = vsel %vm164, %v757, 0
    %v764 = vsel %vm164, %v759, 0
    %766 = vmatprep.subr.bf16.mxu0 0
    %767 = vmatpush1.bf16.xpose.msra.mxu0 0
    %768 = vmatprep.subr.bf16.mxu0 0
    %769 = vmatpush1.bf16.xpose.msra.mxu0 0
    %770 = vmatprep.subr.bf16.mxu0 0
    %771 = vmatpush1.bf16.xpose.msra.mxu0 0
    %772 = vmatprep.subr.bf16.mxu0 0
    %773 = vmatpush1.bf16.xpose.msra.mxu0 0
    %774 = vmatprep.subr.bf16.mxu0 0
    %775 = vmatpush1.bf16.xpose.msra.mxu0 0
    %776 = vmatprep.subr.bf16.mxu0 0
    %777 = vmatpush1.bf16.xpose.msra.mxu0 0
    %778 = vmatprep.subr.bf16.mxu0 0
    %779 = vmatpush1.bf16.xpose.msra.mxu0 0
    %780 = vmatprep.subr.bf16.mxu0 0
    %781 = vmatpush1.bf16.xpose.msra.mxu0 %v764
    %782 = vmatprep.subr.bf16.mxu0 0
    %783 = vmatpush2.bf16.xpose.msra.mxu0 0
    %784 = vmatprep.subr.bf16.mxu0 0
    %785 = vmatpush2.bf16.xpose.msra.mxu0 0
    %786 = vmatprep.subr.bf16.mxu0 0
    %787 = vmatpush2.bf16.xpose.msra.mxu0 0
    %788 = vmatprep.subr.bf16.mxu0 0
    %789 = vmatpush2.bf16.xpose.msra.mxu0 0
    %790 = vmatprep.subr.bf16.mxu0 0
    %791 = vmatpush2.bf16.xpose.msra.mxu0 0
    %792 = vmatprep.subr.bf16.mxu0 0
    %793 = vmatpush2.bf16.xpose.msra.mxu0 0
    %794 = vmatprep.subr.bf16.mxu0 0
    %795 = vmatpush2.bf16.xpose.msra.mxu0 0
    %796 = vmatprep.subr.bf16.mxu0 0
    %797 = vmatpush2.bf16.xpose.msra.mxu0 0
    %798 = vmatprep.mubr.bf16.mxu0 0
    %799 = vmatmul.mubr.bf16.gmra.mxu0 %v761
    %v800 = vpop.f32.mrf.mxu0
    %v801 = vadd.f32 0.0, %v800
    %v802 = vpop.f32.mrf.mxu0
    %v803 = vpop.f32.mrf.mxu0
    %v804 = vpop.f32.mrf.mxu0
    %805 = vdwg.mxu0
    %v806 = vsel %vm164, %v751, -inf
    %807 = vmax.xlane.f32.xlu0 %v806
    %v808 = vpop.xlane.xlu0 %807
    %v809 = vsel %vm164, %v801, -inf
    %810 = vmax.xlane.f32.xlu0 %v809
    %v811 = vpop.xlane.xlu0 %810
    %v812 = vsub.f32 %v751, %v808
    %v813 = vsub.f32 %v801, %v811
    %v814 = vmul.f32 %v812, 1.442695
    %v815 = vpow.pop %v814
    %v816 = vmul.f32 %v813, 1.442695
    %v817 = vpow.pop %v816
    %v818 = vsel %vm164, %v815, 0.0
    %819 = vadd.xlane.f32.xlu0 %v818
    %v820 = vpop.xlane.xlu0 %819
    %v821 = vsel %vm164, %v817, 0.0
    %822 = vadd.xlane.f32.xlu0 %v821
    %v823 = vpop.xlane.xlu0 %822
    %v824 = vrcp.pop %v820
    %v825 = vrcp.pop %v823
    %v826 = vmul.f32 %v815, %v824
    %v827 = vmul.f32 %v817, %v825
    %v828 = vpack.c.bf16 %v826, %v826
    %v829 = vpack.c.bf16 %v827, %v827
    %830 = vrot.lane.b32.xlu0 %v160, 48
    %v831 = vpop.permute.xlu0 %830
    %v833 = vsel %vm164, %v828, 0
    %v836 = vsel %vm288, %v831, 0
    %838 = vmatprep.subr.bf16.mxu0 0
    %839 = vmatpush1.bf16.msra.mxu0 0
    %840 = vmatprep.subr.bf16.mxu0 0
    %841 = vmatpush1.bf16.msra.mxu0 0
    %842 = vmatprep.subr.bf16.mxu0 0
    %843 = vmatpush1.bf16.msra.mxu0 0
    %844 = vmatprep.subr.bf16.mxu0 0
    %845 = vmatpush1.bf16.msra.mxu0 0
    %846 = vmatprep.subr.bf16.mxu0 0
    %847 = vmatpush1.bf16.msra.mxu0 0
    %848 = vmatprep.subr.bf16.mxu0 0
    %849 = vmatpush1.bf16.msra.mxu0 0
    %850 = vmatprep.subr.bf16.mxu0 0
    %851 = vmatpush1.bf16.msra.mxu0 0
    %852 = vmatprep.subr.bf16.mxu0 0
    %853 = vmatpush1.bf16.msra.mxu0 %v836
    %854 = vmatprep.subr.bf16.mxu0 0
    %855 = vmatpush2.bf16.msra.mxu0 0
    %856 = vmatprep.subr.bf16.mxu0 0
    %857 = vmatpush2.bf16.msra.mxu0 0
    %858 = vmatprep.subr.bf16.mxu0 0
    %859 = vmatpush2.bf16.msra.mxu0 0
    %860 = vmatprep.subr.bf16.mxu0 0
    %861 = vmatpush2.bf16.msra.mxu0 0
    %862 = vmatprep.subr.bf16.mxu0 0
    %863 = vmatpush2.bf16.msra.mxu0 0
    %864 = vmatprep.subr.bf16.mxu0 0
    %865 = vmatpush2.bf16.msra.mxu0 0
    %866 = vmatprep.subr.bf16.mxu0 0
    %867 = vmatpush2.bf16.msra.mxu0 0
    %868 = vmatprep.subr.bf16.mxu0 0
    %869 = vmatpush2.bf16.msra.mxu0 0
    %870 = vmatprep.mubr.bf16.mxu0 0
    %871 = vmatmul.mubr.bf16.gmra.mxu0 %v833
    %v872 = vpop.f32.mrf.mxu0
    %v873 = vadd.f32 0.0, %v872
    %v874 = vpop.f32.mrf.mxu0
    %v875 = vpop.f32.mrf.mxu0
    %v876 = vpop.f32.mrf.mxu0
    %877 = vdwg.mxu0
    %878 = vrot.lane.b32.xlu0 %v161, 48
    %v879 = vpop.permute.xlu0 %878
    %v881 = vsel %vm164, %v829, 0
    %v884 = vsel %vm288, %v879, 0
    %886 = vmatprep.subr.bf16.mxu0 0
    %887 = vmatpush1.bf16.msra.mxu0 0
    %888 = vmatprep.subr.bf16.mxu0 0
    %889 = vmatpush1.bf16.msra.mxu0 0
    %890 = vmatprep.subr.bf16.mxu0 0
    %891 = vmatpush1.bf16.msra.mxu0 0
    %892 = vmatprep.subr.bf16.mxu0 0
    %893 = vmatpush1.bf16.msra.mxu0 0
    %894 = vmatprep.subr.bf16.mxu0 0
    %895 = vmatpush1.bf16.msra.mxu0 0
    %896 = vmatprep.subr.bf16.mxu0 0
    %897 = vmatpush1.bf16.msra.mxu0 0
    %898 = vmatprep.subr.bf16.mxu0 0
    %899 = vmatpush1.bf16.msra.mxu0 0
    %900 = vmatprep.subr.bf16.mxu0 0
    %901 = vmatpush1.bf16.msra.mxu0 %v884
    %902 = vmatprep.subr.bf16.mxu0 0
    %903 = vmatpush2.bf16.msra.mxu0 0
    %904 = vmatprep.subr.bf16.mxu0 0
    %905 = vmatpush2.bf16.msra.mxu0 0
    %906 = vmatprep.subr.bf16.mxu0 0
    %907 = vmatpush2.bf16.msra.mxu0 0
    %908 = vmatprep.subr.bf16.mxu0 0
    %909 = vmatpush2.bf16.msra.mxu0 0
    %910 = vmatprep.subr.bf16.mxu0 0
    %911 = vmatpush2.bf16.msra.mxu0 0
    %912 = vmatprep.subr.bf16.mxu0 0
    %913 = vmatpush2.bf16.msra.mxu0 0
    %914 = vmatprep.subr.bf16.mxu0 0
    %915 = vmatpush2.bf16.msra.mxu0 0
    %916 = vmatprep.subr.bf16.mxu0 0
    %917 = vmatpush2.bf16.msra.mxu0 0
    %918 = vmatprep.mubr.bf16.mxu0 0
    %919 = vmatmul.mubr.bf16.gmra.mxu0 %v881
    %v920 = vpop.f32.mrf.mxu0
    %v921 = vadd.f32 0.0, %v920
    %v922 = vpop.f32.mrf.mxu0
    %v923 = vpop.f32.mrf.mxu0
    %v924 = vpop.f32.mrf.mxu0
    %925 = vdwg.mxu0
    %v926 = vpack.c.bf16 %v921, %v873
    %v927 = vpack.c.b16 %v102, %v102
    %928 = vrot.lane.b32.xlu0 %v927, 32
    %v929 = vpop.permute.xlu0 %928
    %v931 = vsel %vm164, %v926, 0
    %v934 = vsel %vm288, %v929, 0
    %936 = vmatprep.subr.bf16.mxu0 0
    %937 = vmatpush1.bf16.msra.mxu0 0
    %938 = vmatprep.subr.bf16.mxu0 0
    %939 = vmatpush1.bf16.msra.mxu0 0
    %940 = vmatprep.subr.bf16.mxu0 0
    %941 = vmatpush1.bf16.msra.mxu0 0
    %942 = vmatprep.subr.bf16.mxu0 0
    %943 = vmatpush1.bf16.msra.mxu0 0
    %944 = vmatprep.subr.bf16.mxu0 0
    %945 = vmatpush1.bf16.msra.mxu0 0
    %946 = vmatprep.subr.bf16.mxu0 0
    %947 = vmatpush1.bf16.msra.mxu0 0
    %948 = vmatprep.subr.bf16.mxu0 0
    %949 = vmatpush1.bf16.msra.mxu0 0
    %950 = vmatprep.subr.bf16.mxu0 0
    %951 = vmatpush1.bf16.msra.mxu0 %v934
    %952 = vmatprep.subr.bf16.mxu0 0
    %953 = vmatpush2.bf16.msra.mxu0 0
    %954 = vmatprep.subr.bf16.mxu0 0
    %955 = vmatpush2.bf16.msra.mxu0 0
    %956 = vmatprep.subr.bf16.mxu0 0
    %957 = vmatpush2.bf16.msra.mxu0 0
    %958 = vmatprep.subr.bf16.mxu0 0
    %959 = vmatpush2.bf16.msra.mxu0 0
    %960 = vmatprep.subr.bf16.mxu0 0
    %961 = vmatpush2.bf16.msra.mxu0 0
    %962 = vmatprep.subr.bf16.mxu0 0
    %963 = vmatpush2.bf16.msra.mxu0 0
    %964 = vmatprep.subr.bf16.mxu0 0
    %965 = vmatpush2.bf16.msra.mxu0 0
    %966 = vmatprep.subr.bf16.mxu0 0
    %967 = vmatpush2.bf16.msra.mxu0 0
    %968 = vmatprep.mubr.bf16.mxu0 0
    %969 = vmatmul.mubr.bf16.gmra.mxu0 %v931
    %v970 = vpop.f32.mrf.mxu0
    %v971 = vadd.f32 0.0, %v970
    %v972 = vpop.f32.mrf.mxu0
    %v973 = vpop.f32.mrf.mxu0
    %v974 = vadd.f32 0.0, %v973
    %v975 = vpop.f32.mrf.mxu0
    %976 = vdwg.mxu0
    %v977 = vadd.f32 %v704, %v971
    %v978 = vadd.f32 %v705, %v974
    %979 = vrot.lane.b32.xlu0 %v160, 104
    %v980 = vpop.permute.xlu0 %979
    %981 = vrot.lane.b32.xlu0 %v160, 72
    %v982 = vpop.permute.xlu0 %981
    %v984 = vsel %vm164, %v980, 0
    %v987 = vsel %vm164, %v982, 0
    %989 = vmatprep.subr.bf16.mxu0 0
    %990 = vmatpush1.bf16.xpose.msra.mxu0 0
    %991 = vmatprep.subr.bf16.mxu0 0
    %992 = vmatpush1.bf16.xpose.msra.mxu0 0
    %993 = vmatprep.subr.bf16.mxu0 0
    %994 = vmatpush1.bf16.xpose.msra.mxu0 0
    %995 = vmatprep.subr.bf16.mxu0 0
    %996 = vmatpush1.bf16.xpose.msra.mxu0 0
    %997 = vmatprep.subr.bf16.mxu0 0
    %998 = vmatpush1.bf16.xpose.msra.mxu0 0
    %999 = vmatprep.subr.bf16.mxu0 0
    %1000 = vmatpush1.bf16.xpose.msra.mxu0 0
    %1001 = vmatprep.subr.bf16.mxu0 0
    %1002 = vmatpush1.bf16.xpose.msra.mxu0 0
    %1003 = vmatprep.subr.bf16.mxu0 0
    %1004 = vmatpush1.bf16.xpose.msra.mxu0 %v987
    %1005 = vmatprep.subr.bf16.mxu0 0
    %1006 = vmatpush2.bf16.xpose.msra.mxu0 0
    %1007 = vmatprep.subr.bf16.mxu0 0
    %1008 = vmatpush2.bf16.xpose.msra.mxu0 0
    %1009 = vmatprep.subr.bf16.mxu0 0
    %1010 = vmatpush2.bf16.xpose.msra.mxu0 0
    %1011 = vmatprep.subr.bf16.mxu0 0
    %1012 = vmatpush2.bf16.xpose.msra.mxu0 0
    %1013 = vmatprep.subr.bf16.mxu0 0
    %1014 = vmatpush2.bf16.xpose.msra.mxu0 0
    %1015 = vmatprep.subr.bf16.mxu0 0
    %1016 = vmatpush2.bf16.xpose.msra.mxu0 0
    %1017 = vmatprep.subr.bf16.mxu0 0
    %1018 = vmatpush2.bf16.xpose.msra.mxu0 0
    %1019 = vmatprep.subr.bf16.mxu0 0
    %1020 = vmatpush2.bf16.xpose.msra.mxu0 0
    %1021 = vmatprep.mubr.bf16.mxu0 0
    %1022 = vmatmul.mubr.bf16.gmra.mxu0 %v984
    %v1023 = vpop.f32.mrf.mxu0
    %v1024 = vadd.f32 0.0, %v1023
    %v1025 = vpop.f32.mrf.mxu0
    %v1026 = vpop.f32.mrf.mxu0
    %v1027 = vpop.f32.mrf.mxu0
    %1028 = vdwg.mxu0
    %1029 = vrot.lane.b32.xlu0 %v161, 104
    %v1030 = vpop.permute.xlu0 %1029
    %1031 = vrot.lane.b32.xlu0 %v161, 72
    %v1032 = vpop.permute.xlu0 %1031
    %v1034 = vsel %vm164, %v1030, 0
    %v1037 = vsel %vm164, %v1032, 0
    %1039 = vmatprep.subr.bf16.mxu0 0
    %1040 = vmatpush1.bf16.xpose.msra.mxu0 0
    %1041 = vmatprep.subr.bf16.mxu0 0
    %1042 = vmatpush1.bf16.xpose.msra.mxu0 0
    %1043 = vmatprep.subr.bf16.mxu0 0
    %1044 = vmatpush1.bf16.xpose.msra.mxu0 0
    %1045 = vmatprep.subr.bf16.mxu0 0
    %1046 = vmatpush1.bf16.xpose.msra.mxu0 0
    %1047 = vmatprep.subr.bf16.mxu0 0
    %1048 = vmatpush1.bf16.xpose.msra.mxu0 0
    %1049 = vmatprep.subr.bf16.mxu0 0
    %1050 = vmatpush1.bf16.xpose.msra.mxu0 0
    %1051 = vmatprep.subr.bf16.mxu0 0
    %1052 = vmatpush1.bf16.xpose.msra.mxu0 0
    %1053 = vmatprep.subr.bf16.mxu0 0
    %1054 = vmatpush1.bf16.xpose.msra.mxu0 %v1037
    %1055 = vmatprep.subr.bf16.mxu0 0
    %1056 = vmatpush2.bf16.xpose.msra.mxu0 0
    %1057 = vmatprep.subr.bf16.mxu0 0
    %1058 = vmatpush2.bf16.xpose.msra.mxu0 0
    %1059 = vmatprep.subr.bf16.mxu0 0
    %1060 = vmatpush2.bf16.xpose.msra.mxu0 0
    %1061 = vmatprep.subr.bf16.mxu0 0
    %1062 = vmatpush2.bf16.xpose.msra.mxu0 0
    %1063 = vmatprep.subr.bf16.mxu0 0
    %1064 = vmatpush2.bf16.xpose.msra.mxu0 0
    %1065 = vmatprep.subr.bf16.mxu0 0
    %1066 = vmatpush2.bf16.xpose.msra.mxu0 0
    %1067 = vmatprep.subr.bf16.mxu0 0
    %1068 = vmatpush2.bf16.xpose.msra.mxu0 0
    %1069 = vmatprep.subr.bf16.mxu0 0
    %1070 = vmatpush2.bf16.xpose.msra.mxu0 0
    %1071 = vmatprep.mubr.bf16.mxu0 0
    %1072 = vmatmul.mubr.bf16.gmra.mxu0 %v1034
    %v1073 = vpop.f32.mrf.mxu0
    %v1074 = vadd.f32 0.0, %v1073
    %v1075 = vpop.f32.mrf.mxu0
    %v1076 = vpop.f32.mrf.mxu0
    %v1077 = vpop.f32.mrf.mxu0
    %1078 = vdwg.mxu0
    %v1079 = vsel %vm164, %v1024, -inf
    %1080 = vmax.xlane.f32.xlu0 %v1079
    %v1081 = vpop.xlane.xlu0 %1080
    %v1082 = vsel %vm164, %v1074, -inf
    %1083 = vmax.xlane.f32.xlu0 %v1082
    %v1084 = vpop.xlane.xlu0 %1083
    %v1085 = vsub.f32 %v1024, %v1081
    %v1086 = vsub.f32 %v1074, %v1084
    %v1087 = vmul.f32 %v1085, 1.442695
    %v1088 = vpow.pop %v1087
    %v1089 = vmul.f32 %v1086, 1.442695
    %v1090 = vpow.pop %v1089
    %v1091 = vsel %vm164, %v1088, 0.0
    %1092 = vadd.xlane.f32.xlu0 %v1091
    %v1093 = vpop.xlane.xlu0 %1092
    %v1094 = vsel %vm164, %v1090, 0.0
    %1095 = vadd.xlane.f32.xlu0 %v1094
    %v1096 = vpop.xlane.xlu0 %1095
    %v1097 = vrcp.pop %v1093
    %v1098 = vrcp.pop %v1096
    %v1099 = vmul.f32 %v1088, %v1097
    %v1100 = vmul.f32 %v1090, %v1098
    %v1101 = vpack.c.bf16 %v1099, %v1099
    %v1102 = vpack.c.bf16 %v1100, %v1100
    %1103 = vrot.lane.b32.xlu0 %v160, 40
    %v1104 = vpop.permute.xlu0 %1103
    %v1106 = vsel %vm164, %v1101, 0
    %v1109 = vsel %vm288, %v1104, 0
    %1111 = vmatprep.subr.bf16.mxu0 0
    %1112 = vmatpush1.bf16.msra.mxu0 0
    %1113 = vmatprep.subr.bf16.mxu0 0
    %1114 = vmatpush1.bf16.msra.mxu0 0
    %1115 = vmatprep.subr.bf16.mxu0 0
    %1116 = vmatpush1.bf16.msra.mxu0 0
    %1117 = vmatprep.subr.bf16.mxu0 0
    %1118 = vmatpush1.bf16.msra.mxu0 0
    %1119 = vmatprep.subr.bf16.mxu0 0
    %1120 = vmatpush1.bf16.msra.mxu0 0
    %1121 = vmatprep.subr.bf16.mxu0 0
    %1122 = vmatpush1.bf16.msra.mxu0 0
    %1123 = vmatprep.subr.bf16.mxu0 0
    %1124 = vmatpush1.bf16.msra.mxu0 0
    %1125 = vmatprep.subr.bf16.mxu0 0
    %1126 = vmatpush1.bf16.msra.mxu0 %v1109
    %1127 = vmatprep.subr.bf16.mxu0 0
    %1128 = vmatpush2.bf16.msra.mxu0 0
    %1129 = vmatprep.subr.bf16.mxu0 0
    %1130 = vmatpush2.bf16.msra.mxu0 0
    %1131 = vmatprep.subr.bf16.mxu0 0
    %1132 = vmatpush2.bf16.msra.mxu0 0
    %1133 = vmatprep.subr.bf16.mxu0 0
    %1134 = vmatpush2.bf16.msra.mxu0 0
    %1135 = vmatprep.subr.bf16.mxu0 0
    %1136 = vmatpush2.bf16.msra.mxu0 0
    %1137 = vmatprep.subr.bf16.mxu0 0
    %1138 = vmatpush2.bf16.msra.mxu0 0
    %1139 = vmatprep.subr.bf16.mxu0 0
    %1140 = vmatpush2.bf16.msra.mxu0 0
    %1141 = vmatprep.subr.bf16.mxu0 0
    %1142 = vmatpush2.bf16.msra.mxu0 0
    %1143 = vmatprep.mubr.bf16.mxu0 0
    %1144 = vmatmul.mubr.bf16.gmra.mxu0 %v1106
    %v1145 = vpop.f32.mrf.mxu0
    %v1146 = vadd.f32 0.0, %v1145
    %v1147 = vpop.f32.mrf.mxu0
    %v1148 = vpop.f32.mrf.mxu0
    %v1149 = vpop.f32.mrf.mxu0
    %1150 = vdwg.mxu0
    %1151 = vrot.lane.b32.xlu0 %v161, 40
    %v1152 = vpop.permute.xlu0 %1151
    %v1154 = vsel %vm164, %v1102, 0
    %v1157 = vsel %vm288, %v1152, 0
    %1159 = vmatprep.subr.bf16.mxu0 0
    %1160 = vmatpush1.bf16.msra.mxu0 0
    %1161 = vmatprep.subr.bf16.mxu0 0
    %1162 = vmatpush1.bf16.msra.mxu0 0
    %1163 = vmatprep.subr.bf16.mxu0 0
    %1164 = vmatpush1.bf16.msra.mxu0 0
    %1165 = vmatprep.subr.bf16.mxu0 0
    %1166 = vmatpush1.bf16.msra.mxu0 0
    %1167 = vmatprep.subr.bf16.mxu0 0
    %1168 = vmatpush1.bf16.msra.mxu0 0
    %1169 = vmatprep.subr.bf16.mxu0 0
    %1170 = vmatpush1.bf16.msra.mxu0 0
    %1171 = vmatprep.subr.bf16.mxu0 0
    %1172 = vmatpush1.bf16.msra.mxu0 0
    %1173 = vmatprep.subr.bf16.mxu0 0
    %1174 = vmatpush1.bf16.msra.mxu0 %v1157
    %1175 = vmatprep.subr.bf16.mxu0 0
    %1176 = vmatpush2.bf16.msra.mxu0 0
    %1177 = vmatprep.subr.bf16.mxu0 0
    %1178 = vmatpush2.bf16.msra.mxu0 0
    %1179 = vmatprep.subr.bf16.mxu0 0
    %1180 = vmatpush2.bf16.msra.mxu0 0
    %1181 = vmatprep.subr.bf16.mxu0 0
    %1182 = vmatpush2.bf16.msra.mxu0 0
    %1183 = vmatprep.subr.bf16.mxu0 0
    %1184 = vmatpush2.bf16.msra.mxu0 0
    %1185 = vmatprep.subr.bf16.mxu0 0
    %1186 = vmatpush2.bf16.msra.mxu0 0
    %1187 = vmatprep.subr.bf16.mxu0 0
    %1188 = vmatpush2.bf16.msra.mxu0 0
    %1189 = vmatprep.subr.bf16.mxu0 0
    %1190 = vmatpush2.bf16.msra.mxu0 0
    %1191 = vmatprep.mubr.bf16.mxu0 0
    %1192 = vmatmul.mubr.bf16.gmra.mxu0 %v1154
    %v1193 = vpop.f32.mrf.mxu0
    %v1194 = vadd.f32 0.0, %v1193
    %v1195 = vpop.f32.mrf.mxu0
    %v1196 = vpop.f32.mrf.mxu0
    %v1197 = vpop.f32.mrf.mxu0
    %1198 = vdwg.mxu0
    %v1199 = vpack.c.bf16 %v1194, %v1146
    %v1200 = vpack.c.b16 %v103, %v103
    %1201 = vrot.lane.b32.xlu0 %v1200, 32
    %v1202 = vpop.permute.xlu0 %1201
    %v1204 = vsel %vm164, %v1199, 0
    %v1207 = vsel %vm288, %v1202, 0
    %1209 = vmatprep.subr.bf16.mxu0 0
    %1210 = vmatpush1.bf16.msra.mxu0 0
    %1211 = vmatprep.subr.bf16.mxu0 0
    %1212 = vmatpush1.bf16.msra.mxu0 0
    %1213 = vmatprep.subr.bf16.mxu0 0
    %1214 = vmatpush1.bf16.msra.mxu0 0
    %1215 = vmatprep.subr.bf16.mxu0 0
    %1216 = vmatpush1.bf16.msra.mxu0 0
    %1217 = vmatprep.subr.bf16.mxu0 0
    %1218 = vmatpush1.bf16.msra.mxu0 0
    %1219 = vmatprep.subr.bf16.mxu0 0
    %1220 = vmatpush1.bf16.msra.mxu0 0
    %1221 = vmatprep.subr.bf16.mxu0 0
    %1222 = vmatpush1.bf16.msra.mxu0 0
    %1223 = vmatprep.subr.bf16.mxu0 0
    %1224 = vmatpush1.bf16.msra.mxu0 %v1207
    %1225 = vmatprep.subr.bf16.mxu0 0
    %1226 = vmatpush2.bf16.msra.mxu0 0
    %1227 = vmatprep.subr.bf16.mxu0 0
    %1228 = vmatpush2.bf16.msra.mxu0 0
    %1229 = vmatprep.subr.bf16.mxu0 0
    %1230 = vmatpush2.bf16.msra.mxu0 0
    %1231 = vmatprep.subr.bf16.mxu0 0
    %1232 = vmatpush2.bf16.msra.mxu0 0
    %1233 = vmatprep.subr.bf16.mxu0 0
    %1234 = vmatpush2.bf16.msra.mxu0 0
    %1235 = vmatprep.subr.bf16.mxu0 0
    %1236 = vmatpush2.bf16.msra.mxu0 0
    %1237 = vmatprep.subr.bf16.mxu0 0
    %1238 = vmatpush2.bf16.msra.mxu0 0
    %1239 = vmatprep.subr.bf16.mxu0 0
    %1240 = vmatpush2.bf16.msra.mxu0 0
    %1241 = vmatprep.mubr.bf16.mxu0 0
    %1242 = vmatmul.mubr.bf16.gmra.mxu0 %v1204
    %v1243 = vpop.f32.mrf.mxu0
    %v1244 = vadd.f32 0.0, %v1243
    %v1245 = vpop.f32.mrf.mxu0
    %v1246 = vpop.f32.mrf.mxu0
    %v1247 = vadd.f32 0.0, %v1246
    %v1248 = vpop.f32.mrf.mxu0
    %1249 = vdwg.mxu0
    %v1250 = vadd.f32 %v977, %v1244
    %v1251 = vadd.f32 %v978, %v1247
    %v1252 = vadd.f32 %v28, %v1250
    %v1253 = vadd.f32 %v29, %v1251
    %v1254 = vsel %vm51, %v1252, 0.0
    %1255 = vadd.xlane.f32.xlu0 %v1254
    %v1256 = vpop.xlane.xlu0 %1255
    %v1257 = vsel %vm51, %v1253, 0.0
    %1258 = vadd.xlane.f32.xlu0 %v1257
    %v1259 = vpop.xlane.xlu0 %1258
    %v1260 = vmul.f32 %v1256, %v58
    %v1261 = vmul.f32 %v1259, %v58
    %v1262 = vsub.f32 %v1252, %v1260
    %v1263 = vsub.f32 %v1253, %v1261
    %v1264 = vmul.f32 %v1262, %v1262
    %v1265 = vmul.f32 %v1263, %v1263
    %v1266 = vsel %vm51, %v1264, 0.0
    %1267 = vadd.xlane.f32.xlu0 %v1266
    %v1268 = vpop.xlane.xlu0 %1267
    %v1269 = vsel %vm51, %v1265, 0.0
    %1270 = vadd.xlane.f32.xlu0 %v1269
    %v1271 = vpop.xlane.xlu0 %1270
    %v1272 = vmul.f32 %v1268, %v58
    %v1273 = vmul.f32 %v1271, %v58
    %v1274 = vadd.f32 %v1272, 1e-05
    %v1275 = vadd.f32 %v1273, 1e-05
    %v1276 = vrsqrt.pop %v1274
    %v1277 = vrsqrt.pop %v1275
    %v1278 = vmul.f32 %v1262, %v1276
    %v1279 = vmul.f32 %v1263, %v1277
    %v1280 = vlaneseq
    %v1281 = vshrl.u32 %v1280, 7
    %v1282 = vsub.s32 2, %v1281
    %v1283 = vrot.slane %v30, %v1282
    %v1284 = vmul.f32 %v1278, %v1283
    %v1285 = vmul.f32 %v1279, %v1283
    %v1286 = vlaneseq
    %v1287 = vshrl.u32 %v1286, 7
    %v1288 = vsub.s32 3, %v1287
    %v1289 = vrot.slane %v30, %v1288
    %v1290 = vadd.f32 %v1284, %v1289
    %v1291 = vadd.f32 %v1285, %v1289
    %v1292 = vpack.c.bf16 %v1291, %v1290
    %v1293 = vlaneseq
    %v1294 = vshrl.u32 %v1293, 7
    %v1295 = vsub.s32 6, %v1294
    %v1296 = vrot.slane %v30, %v1295
    %v1297 = vunpack.c.h.b16 %v31
    %v1298 = vunpack.c.h.b16 %v32
    %v1299 = vunpack.c.h.b16 %v33
    %v1300 = vunpack.c.h.b16 %v34
    %v1301 = vpack.c.b16 %v1298, %v1297
    %v1302 = vpack.c.b16 %v1300, %v1299
    %v1306 = vsel %vm51, %v1292, 0
    %1308 = vmatprep.subr.bf16.mxu0 0
    %1309 = vmatpush1.bf16.msra.mxu0 0
    %1310 = vmatprep.subr.bf16.mxu0 0
    %1311 = vmatpush1.bf16.msra.mxu0 0
    %1312 = vmatprep.subr.bf16.mxu0 0
    %1313 = vmatpush1.bf16.msra.mxu0 0
    %1314 = vmatprep.subr.bf16.mxu0 0
    %1315 = vmatpush1.bf16.msra.mxu0 0
    %1316 = vmatprep.subr.bf16.mxu0 0
    %1317 = vmatpush1.bf16.msra.mxu0 0
    %1318 = vmatprep.subr.bf16.mxu0 0
    %1319 = vmatpush1.bf16.msra.mxu0 0
    %1320 = vmatprep.subr.bf16.mxu0 0
    %1321 = vmatpush1.bf16.msra.mxu0 %v1302
    %1322 = vmatprep.subr.bf16.mxu0 0
    %1323 = vmatpush1.bf16.msra.mxu0 %v1301
    %1324 = vmatprep.subr.bf16.mxu0 0
    %1325 = vmatpush2.bf16.msra.mxu0 0
    %1326 = vmatprep.subr.bf16.mxu0 0
    %1327 = vmatpush2.bf16.msra.mxu0 0
    %1328 = vmatprep.subr.bf16.mxu0 0
    %1329 = vmatpush2.bf16.msra.mxu0 0
    %1330 = vmatprep.subr.bf16.mxu0 0
    %1331 = vmatpush2.bf16.msra.mxu0 0
    %1332 = vmatprep.subr.bf16.mxu0 0
    %1333 = vmatpush2.bf16.msra.mxu0 0
    %1334 = vmatprep.subr.bf16.mxu0 0
    %1335 = vmatpush2.bf16.msra.mxu0 0
    %1336 = vmatprep.subr.bf16.mxu0 0
    %1337 = vmatpush2.bf16.msra.mxu0 0
    %1338 = vmatprep.subr.bf16.mxu0 0
    %1339 = vmatpush2.bf16.msra.mxu0 0
    %1340 = vmatprep.mubr.bf16.mxu0 0
    %1341 = vmatmul.mubr.bf16.gmra.mxu0 %v1306
    %v1342 = vpop.f32.mrf.mxu0
    %v1343 = vadd.f32 %v1296, %v1342
    %v1344 = vpop.f32.mrf.mxu0
    %v1345 = vpop.f32.mrf.mxu0
    %v1346 = vadd.f32 %v1296, %v1345
    %v1347 = vpop.f32.mrf.mxu0
    %1348 = vdwg.mxu0
    %v1349 = vmax.f32 %v1343, 0.0
    %v1350 = vmax.f32 %v1346, 0.0
    %v1351 = vpack.c.bf16 %v1350, %v1349
    %v1352 = vlaneseq
    %v1353 = vshrl.u32 %v1352, 7
    %v1354 = vsub.s32 7, %v1353
    %v1355 = vrot.slane %v30, %v1354
    %v1372 = vunpack.c.l.b16 %v35
    %v1373 = vunpack.c.l.b16 %v36
    %v1374 = vunpack.c.l.b16 %v37
    %v1375 = vunpack.c.l.b16 %v38
    %v1376 = vunpack.c.l.b16 %v39
    %v1377 = vunpack.c.l.b16 %v40
    %v1378 = vunpack.c.l.b16 %v41
    %v1379 = vunpack.c.l.b16 %v42
    %v1380 = vunpack.c.l.b16 %v43
    %v1381 = vunpack.c.l.b16 %v44
    %v1382 = vunpack.c.l.b16 %v45
    %v1383 = vunpack.c.l.b16 %v46
    %v1384 = vunpack.c.l.b16 %v47
    %v1385 = vunpack.c.l.b16 %v48
    %v1386 = vunpack.c.l.b16 %v49
    %v1387 = vunpack.c.l.b16 %v50
    %v1388 = vpack.c.b16 %v1373, %v1372
    %v1389 = vpack.c.b16 %v1375, %v1374
    %v1390 = vpack.c.b16 %v1377, %v1376
    %v1391 = vpack.c.b16 %v1379, %v1378
    %v1392 = vpack.c.b16 %v1381, %v1380
    %v1393 = vpack.c.b16 %v1383, %v1382
    %v1394 = vpack.c.b16 %v1385, %v1384
    %v1395 = vpack.c.b16 %v1387, %v1386
    %1404 = vmatprep.subr.bf16.mxu0 0
    %1405 = vmatpush1.bf16.msra.mxu0 %v1395
    %1406 = vmatprep.subr.bf16.mxu0 0
    %1407 = vmatpush1.bf16.msra.mxu0 %v1394
    %1408 = vmatprep.subr.bf16.mxu0 0
    %1409 = vmatpush1.bf16.msra.mxu0 %v1393
    %1410 = vmatprep.subr.bf16.mxu0 0
    %1411 = vmatpush1.bf16.msra.mxu0 %v1392
    %1412 = vmatprep.subr.bf16.mxu0 0
    %1413 = vmatpush1.bf16.msra.mxu0 %v1391
    %1414 = vmatprep.subr.bf16.mxu0 0
    %1415 = vmatpush1.bf16.msra.mxu0 %v1390
    %1416 = vmatprep.subr.bf16.mxu0 0
    %1417 = vmatpush1.bf16.msra.mxu0 %v1389
    %1418 = vmatprep.subr.bf16.mxu0 0
    %1419 = vmatpush1.bf16.msra.mxu0 %v1388
    %1420 = vmatprep.subr.bf16.mxu0 0
    %1421 = vmatpush2.bf16.msra.mxu0 0
    %1422 = vmatprep.subr.bf16.mxu0 0
    %1423 = vmatpush2.bf16.msra.mxu0 0
    %1424 = vmatprep.subr.bf16.mxu0 0
    %1425 = vmatpush2.bf16.msra.mxu0 0
    %1426 = vmatprep.subr.bf16.mxu0 0
    %1427 = vmatpush2.bf16.msra.mxu0 0
    %1428 = vmatprep.subr.bf16.mxu0 0
    %1429 = vmatpush2.bf16.msra.mxu0 0
    %1430 = vmatprep.subr.bf16.mxu0 0
    %1431 = vmatpush2.bf16.msra.mxu0 0
    %1432 = vmatprep.subr.bf16.mxu0 0
    %1433 = vmatpush2.bf16.msra.mxu0 0
    %1434 = vmatprep.subr.bf16.mxu0 0
    %1435 = vmatpush2.bf16.msra.mxu0 0
    %1436 = vmatprep.mubr.bf16.mxu0 0
    %1437 = vmatmul.mubr.bf16.gmra.mxu0 %v1351
    %v1438 = vpop.f32.mrf.mxu0
    %v1439 = vadd.f32 %v1355, %v1438
    %v1440 = vpop.f32.mrf.mxu0
    %v1441 = vpop.f32.mrf.mxu0
    %v1442 = vadd.f32 %v1355, %v1441
    %v1443 = vpop.f32.mrf.mxu0
    %1444 = vdwg.mxu0
    %v1445 = vadd.f32 %v1252, %v1439
    %v1446 = vadd.f32 %v1253, %v1442
    %1447 = vst.msk [vmem:[#allocation2] sm:$0xff] %vm51, %v1445
    %1448 = vst.msk [vmem:[#allocation2 + $0x8] sm:$0xff] %vm51, %v1446
    // Predicated region
    $region22: #{tpu_custom_call.1} parent=1 // pred_check
      _
    $region23: #{tpu_custom_call.1} parent=1 // pred_check_branch
      %1450 = sbr.rel (0) target = $region25
    $region24: #{tpu_custom_call.1} parent=1 // pred_region
      %s1452 = ssub.s32 256, 256
      %1453 = vsyncadd [#allocation3], %s1452
      %s1454 = sshll.u32 [#allocation2], 4
      %s1455 = int_to_ptr.vmem [resolvable:$true] %s1454
      %1460 = dma.vmem_to_hbm [thread:$0]  %s1455, 256, %s4, [#allocation3], 128, 128, 8
    $region25: #{tpu_custom_call.1} parent=1 // pred_fallthru
      _
    // Predicated region
    $region26: #{tpu_custom_call.1} parent=1 // pred_check
      _
    $region27: #{tpu_custom_call.1} parent=1 // pred_check_branch
      %1462 = sbr.rel (0) target = $region29
    $region28: #{tpu_custom_call.1} parent=1 // pred_region
      %1463 = dma.done [#allocation3], 256
    $region29: #{tpu_custom_call.1} parent=1 // pred_fallthru
      _
    %1464 = vsyncpa [#allocation3], 1

</llo_original>
